<compile_context>
chip_gen: v7x
topology: tpu7x:2x2x1
jax: 0.10.0
libtpu: 0.0.40
codegen_flags: <defaults>
</compile_context>

<pallas_src>
import functools

import jax
import jax.numpy as jnp
from jax import lax
from jax.experimental import pallas as pl
from jax.experimental.pallas import tpu as pltpu


def _round_up(a: int, b: int) -> int:
    return (a + b - 1) // b * b


@functools.lru_cache(maxsize=None)
def _physical_vmem_bytes() -> int:
    """Physical VMEM of the attached TPU; conservative 64 MiB (v7x) fallback."""
    try:
        vmem = int(pltpu.get_tpu_info().vmem_capacity_bytes)
        if vmem > 0:
            return vmem
    except Exception:
        pass
    return 64 * 1024 * 1024


def _tile_vmem_bytes(tm: int, tn: int, dim: int, a_bytes: int, w_bytes: int) -> int:
    """Estimated VMEM for one pipelined grid step (incl. double buffers)."""
    x_bufs = 2 * tm * dim * a_bytes            # input token tile, double-buffered
    w_bufs = 2 * 3 * tn * dim * w_bytes        # w1 + w3 + w2 tiles, double-buffered
    out_bufs = 2 * tm * dim * a_bytes          # output tile, double-buffered
    acc = tm * dim * 4                         # persistent f32 accumulator
    interm = tm * tn * (3 * 4 + a_bytes)       # h1, h3, h (f32) + compute-dtype cast
    return x_bufs + w_bufs + out_bufs + acc + interm


_TM_CANDIDATES = (2048, 1536, 1024, 768, 512, 384, 256, 192, 128, 96, 64, 48, 32, 16, 8)
_TN_CANDIDATES = (512, 256, 128)


def _choose_tiles(M, dim, hidden, a_bytes, w_bytes, sub, budget):
    """Pick (tm, tn) maximizing tm (weight reuse) within the VMEM budget."""
    tm_cap = min(_round_up(M, sub), 2048)
    tn_cap = _round_up(hidden, 128)
    tms = sorted({t for t in _TM_CANDIDATES if t % sub == 0 and t <= tm_cap} | {tm_cap},
                 reverse=True)
    tns = [t for t in _TN_CANDIDATES if t <= tn_cap] or [tn_cap]
    best = None
    for tn in tns:
        for tm in tms:  # descending: first fit is the largest tm for this tn
            if _tile_vmem_bytes(tm, tn, dim, a_bytes, w_bytes) <= budget:
                if best is None or tm > best[0]:
                    best = (tm, tn)
                break
    if best is None:  # pathological: even smallest tile over budget; run anyway
        best = (tms[-1], tns[-1])
    return best


def _ffn_kernel(x_ref, w1_ref, w3_ref, w2_ref, o_ref, acc_ref):
    # x_ref  : (tm, dim)   token tile
    # w1_ref : (tn, dim)   gate proj rows (PyTorch (out, in) layout)
    # w3_ref : (tn, dim)   up   proj rows
    # w2_ref : (dim, tn)   down proj cols
    # o_ref  : (tm, dim)   output tile (resident across the k axis)
    # acc_ref: (tm, dim)   f32 accumulator scratch
    k = pl.program_id(1)

    x = x_ref[...]
    # Contract over in_features (axis 1 of both operands) == x @ W.T on the MXU.
    dn = (((1,), (1,)), ((), ()))
    h1 = lax.dot_general(x, w1_ref[...], dn, preferred_element_type=jnp.float32)
    h3 = lax.dot_general(x, w3_ref[...], dn, preferred_element_type=jnp.float32)
    # SiLU(h1) * h3 : VPU elementwise + EUP sigmoid, in f32.
    h = (h1 * jax.nn.sigmoid(h1)) * h3
    # Second matmul in the compute dtype (bf16 for bf16 inputs), f32 accumulate.
    contrib = lax.dot_general(h.astype(x.dtype), w2_ref[...], dn,
                              preferred_element_type=jnp.float32)

    @pl.when(k == 0)
    def _():
        acc_ref[...] = contrib          # direct write: no zero-init + RMW

    @pl.when(k > 0)
    def _():
        acc_ref[...] += contrib

    @pl.when(k == pl.num_programs(1) - 1)
    def _():
        o_ref[...] = acc_ref[...].astype(o_ref.dtype)


@functools.partial(jax.jit, static_argnames=("tm", "tn", "vmem_limit_bytes"))
def feed_forward_pallas(x, w1, w2, w3, *, tm=None, tn=None, vmem_limit_bytes=None):
    """llama FeedForward.  x: (..., dim); w1, w3: (hidden, dim); w2: (dim, hidden).

    Weights stay in PyTorch (out_features, in_features) layout.  Tile sizes default
    to the largest token tile tm that fits the detected VMEM budget (tm is the
    weight-reuse / arithmetic-intensity knob); pass tm / tn to override.
    """
    orig_shape = x.shape
    dim = orig_shape[-1]
    hidden = w1.shape[0]
    assert w1.shape == (hidden, dim)
    assert w3.shape == (hidden, dim)
    assert w2.shape == (dim, hidden)

    x2d = x.reshape(-1, dim)
    M = x2d.shape[0]

    a_bytes = jnp.dtype(x.dtype).itemsize
    w_bytes = jnp.dtype(w1.dtype).itemsize
    # Sublane packing of the compute dtype: (8,128) f32, (16,128) bf16, (32,128) i8.
    sub = {1: 32, 2: 16, 4: 8}.get(a_bytes, 8)

    phys_vmem = _physical_vmem_bytes()
    if vmem_limit_bytes is None:
        # ~85% of physical: headroom for compiler-managed temporaries beyond the
        # ones counted in _tile_vmem_bytes.
        vmem_limit_bytes = int(phys_vmem * 0.85)
    tile_budget = min(int(phys_vmem * 0.75), vmem_limit_bytes)

    auto_tm, auto_tn = _choose_tiles(M, dim, hidden, a_bytes, w_bytes, sub, tile_budget)
    tm = auto_tm if tm is None else min(tm, _round_up(M, sub))
    tn = auto_tn if tn is None else min(tn, _round_up(hidden, 128))

    # --- token (M) tiling: zero-pad any ragged tail --------------------------
    m_pad = _round_up(M, tm)
    if m_pad != M:
        x2d = jnp.pad(x2d, ((0, m_pad - M), (0, 0)))  # zero rows -> zero output rows

    # --- hidden (reduction) tiling: zero-pad the hidden axis -----------------
    h_pad = _round_up(hidden, tn)
    if h_pad != hidden:
        # Padded hidden units contribute silu(0) * 0 = 0 to the output.
        w1 = jnp.pad(w1, ((0, h_pad - hidden), (0, 0)))
        w3 = jnp.pad(w3, ((0, h_pad - hidden), (0, 0)))
        w2 = jnp.pad(w2, ((0, 0), (0, h_pad - hidden)))

    grid_m = m_pad // tm
    grid = (grid_m, h_pad // tn)

    cost = pl.CostEstimate(
        flops=6 * m_pad * dim * h_pad,                         # three matmuls
        transcendentals=m_pad * h_pad,                         # sigmoid
        bytes_accessed=(m_pad * dim * a_bytes                  # x read
                        + grid_m * 3 * h_pad * dim * w_bytes   # weights, re-read per token tile
                        + m_pad * dim * a_bytes),              # y write
    )

    out = pl.pallas_call(
        _ffn_kernel,
        out_shape=jax.ShapeDtypeStruct((m_pad, dim), x.dtype),
        grid_spec=pltpu.PrefetchScalarGridSpec(
            num_scalar_prefetch=0,
            grid=grid,
            in_specs=[
                pl.BlockSpec((tm, dim), lambda i, k: (i, 0)),   # x token tile
                pl.BlockSpec((tn, dim), lambda i, k: (k, 0)),   # w1 rows
                pl.BlockSpec((tn, dim), lambda i, k: (k, 0)),   # w3 rows
                pl.BlockSpec((dim, tn), lambda i, k: (0, k)),   # w2 cols
            ],
            out_specs=pl.BlockSpec((tm, dim), lambda i, k: (i, 0)),
            scratch_shapes=[pltpu.VMEM((tm, dim), jnp.float32)],
        ),
        compiler_params=pltpu.CompilerParams(
            dimension_semantics=("parallel", "arbitrary"),
            vmem_limit_bytes=vmem_limit_bytes,
        ),
        cost_estimate=cost,
    )(x2d, w1, w3, w2)

    if m_pad != M:
        out = out[:M]
    return out.reshape(orig_shape)


def _llama_hidden_dim(dim, hidden_dim, multiple_of, ffn_dim_multiplier):
    hidden_dim = int(2 * hidden_dim / 3)
    if ffn_dim_multiplier is not None:
        hidden_dim = int(ffn_dim_multiplier * hidden_dim)
    return multiple_of * ((hidden_dim + multiple_of - 1) // multiple_of)


if __name__ == "__main__":
    # Small but lane-dense shapes (dim multiple of 128 keeps output stores dense).
    dim = 128
    hidden = _llama_hidden_dim(dim, 4 * dim, 128, None)  # int(2*512/3)=341 -> 384
    batch, seq = 2, 64                                   # M = 128 tokens

    key = jax.random.PRNGKey(0)
    kx, k1, k2, k3 = jax.random.split(key, 4)
    dtype = jnp.bfloat16  # bf16 MXU inputs; accumulation stays f32 in-kernel
    x = jax.random.normal(kx, (batch, seq, dim), jnp.float32).astype(dtype)
    w1 = (jax.random.normal(k1, (hidden, dim), jnp.float32) / dim ** 0.5).astype(dtype)
    w2 = (jax.random.normal(k2, (dim, hidden), jnp.float32) / hidden ** 0.5).astype(dtype)
    w3 = (jax.random.normal(k3, (hidden, dim), jnp.float32) / dim ** 0.5).astype(dtype)

    # Pure-JAX f32 reference on the same (bf16-quantized) inputs.
    xf, w1f, w2f, w3f = (a.astype(jnp.float32) for a in (x, w1, w2, w3))
    h1 = xf @ w1f.T
    h3 = xf @ w3f.T
    ref = ((h1 * jax.nn.sigmoid(h1)) * h3) @ w2f.T

    # 1) Auto-selected tiles (single token tile; hidden padded to tn).
    y_auto = jax.block_until_ready(feed_forward_pallas(x, w1, w2, w3))
    # 2) Small explicit tiles so the test exercises both grid axes
    #    (2 token tiles x 3 hidden-reduction steps).
    y_tiled = jax.block_until_ready(feed_forward_pallas(x, w1, w2, w3, tm=64, tn=128))

    for y in (y_auto, y_tiled):
        assert y.shape == x.shape and y.dtype == x.dtype
        err = float(jnp.max(jnp.abs(y.astype(jnp.float32) - ref)))
        assert jnp.allclose(y.astype(jnp.float32), ref, atol=2e-2, rtol=2e-2), (
            f"mismatch vs reference, max abs err {err}")
    print("KERNEL_OK")
</pallas_src>

<mosaic_0001>
module attributes {stable_mosaic.version = 11 : i64} {
  func.func @_ffn_kernel(%arg0: i32, %arg1: i32, %arg2: memref<128x128xbf16, #tpu.memory_space<vmem>>, %arg3: memref<256x128xbf16, #tpu.memory_space<vmem>>, %arg4: memref<256x128xbf16, #tpu.memory_space<vmem>>, %arg5: memref<128x256xbf16, #tpu.memory_space<vmem>>, %arg6: memref<128x128xbf16, #tpu.memory_space<vmem>>, %arg7: memref<128x128xf32, #tpu.memory_space<vmem>>) attributes {dimension_semantics = [#tpu.dimension_semantics<parallel>, #tpu.dimension_semantics<arbitrary>], iteration_bounds = array<i64: 1, 2>, scalar_prefetch = 0 : i64, scratch_operands = 1 : i64, tpu.core_type = #tpu.core_type<tc>, window_params = [{transform_indices = @transform_0, window_bounds = array<i64: 128, 128>}, {transform_indices = @transform_1, window_bounds = array<i64: 256, 128>}, {transform_indices = @transform_2, window_bounds = array<i64: 256, 128>}, {transform_indices = @transform_3, window_bounds = array<i64: 128, 256>}, {transform_indices = @transform_4, window_bounds = array<i64: 128, 128>}]} {
    %c0 = arith.constant 0 : index
    %c0_0 = arith.constant 0 : index
    %0 = vector.load %arg2[%c0, %c0_0] : memref<128x128xbf16, #tpu.memory_space<vmem>>, vector<128x128xbf16>
    %c0_1 = arith.constant 0 : index
    %c0_2 = arith.constant 0 : index
    %1 = vector.load %arg3[%c0_1, %c0_2] : memref<256x128xbf16, #tpu.memory_space<vmem>>, vector<256x128xbf16>
    %cst = arith.constant dense<0.000000e+00> : vector<128x256xf32>
    %2 = tpu.matmul %0, %1, %cst {dimension_numbers = #tpu.dot_dimension_numbers<[1], [1], [0], [0], [0, 0, 1, 0], [], []>} : vector<128x128xbf16>, vector<256x128xbf16>, vector<128x256xf32> -> vector<128x256xf32>
    %c0_3 = arith.constant 0 : index
    %c0_4 = arith.constant 0 : index
    %3 = vector.load %arg4[%c0_3, %c0_4] : memref<256x128xbf16, #tpu.memory_space<vmem>>, vector<256x128xbf16>
    %cst_5 = arith.constant dense<0.000000e+00> : vector<128x256xf32>
    %4 = tpu.matmul %0, %3, %cst_5 {dimension_numbers = #tpu.dot_dimension_numbers<[1], [1], [0], [0], [0, 0, 1, 0], [], []>} : vector<128x128xbf16>, vector<256x128xbf16>, vector<128x256xf32> -> vector<128x256xf32>
    %5 = arith.negf %2 : vector<128x256xf32>
    %6 = math.exp %5 : vector<128x256xf32>
    %cst_6 = arith.constant 1.000000e+00 : f32
    %7 = vector.broadcast %cst_6 : f32 to vector<128x256xf32>
    %8 = arith.addf %7, %6 : vector<128x256xf32>
    %9 = arith.divf %7, %8 : vector<128x256xf32>
    %10 = arith.mulf %2, %9 : vector<128x256xf32>
    %11 = arith.mulf %10, %4 : vector<128x256xf32>
    %12 = arith.truncf %11 : vector<128x256xf32> to vector<128x256xbf16>
    %c0_7 = arith.constant 0 : index
    %c0_8 = arith.constant 0 : index
    %13 = vector.load %arg5[%c0_7, %c0_8] : memref<128x256xbf16, #tpu.memory_space<vmem>>, vector<128x256xbf16>
    %cst_9 = arith.constant dense<0.000000e+00> : vector<128x128xf32>
    %14 = tpu.matmul %12, %13, %cst_9 {dimension_numbers = #tpu.dot_dimension_numbers<[1], [1], [0], [0], [0, 0, 1, 0], [], []>} : vector<128x256xbf16>, vector<128x256xbf16>, vector<128x128xf32> -> vector<128x128xf32>
    %c0_i32 = arith.constant 0 : i32
    %15 = arith.cmpi eq, %arg1, %c0_i32 : i32
    %16 = arith.extui %15 : i1 to i32
    %c0_i32_10 = arith.constant 0 : i32
    %17 = arith.cmpi ne, %16, %c0_i32_10 : i32
    scf.if %17 {
      %c0_14 = arith.constant 0 : index
      %c0_15 = arith.constant 0 : index
      %24 = vector.load %arg7[%c0_14, %c0_15] : memref<128x128xf32, #tpu.memory_space<vmem>>, vector<128x128xf32>
      tpu.vector_store %arg7[%c0_14, %c0_15], %14 {strides = array<i32>} : memref<128x128xf32, #tpu.memory_space<vmem>>, vector<128x128xf32>,
    } else {
    }
    %c0_i32_11 = arith.constant 0 : i32
    %18 = arith.cmpi sgt, %arg1, %c0_i32_11 : i32
    %19 = arith.extui %18 : i1 to i32
    %c0_i32_12 = arith.constant 0 : i32
    %20 = arith.cmpi ne, %19, %c0_i32_12 : i32
    scf.if %20 {
      %c0_14 = arith.constant 0 : index
      %c0_15 = arith.constant 0 : index
      %24 = vector.load %arg7[%c0_14, %c0_15] : memref<128x128xf32, #tpu.memory_space<vmem>>, vector<128x128xf32>
      %25 = arith.addf %24, %14 : vector<128x128xf32>
      %c0_16 = arith.constant 0 : index
      %c0_17 = arith.constant 0 : index
      %26 = vector.load %arg7[%c0_16, %c0_17] : memref<128x128xf32, #tpu.memory_space<vmem>>, vector<128x128xf32>
      tpu.vector_store %arg7[%c0_16, %c0_17], %25 {strides = array<i32>} : memref<128x128xf32, #tpu.memory_space<vmem>>, vector<128x128xf32>,
    } else {
    }
    %c1_i32 = arith.constant 1 : i32
    %21 = arith.cmpi eq, %arg1, %c1_i32 : i32
    %22 = arith.extui %21 : i1 to i32
    %c0_i32_13 = arith.constant 0 : i32
    %23 = arith.cmpi ne, %22, %c0_i32_13 : i32
    scf.if %23 {
      %c0_14 = arith.constant 0 : index
      %c0_15 = arith.constant 0 : index
      %24 = vector.load %arg7[%c0_14, %c0_15] : memref<128x128xf32, #tpu.memory_space<vmem>>, vector<128x128xf32>
      %25 = arith.truncf %24 : vector<128x128xf32> to vector<128x128xbf16>
      %c0_16 = arith.constant 0 : index
      %c0_17 = arith.constant 0 : index
      %26 = vector.load %arg6[%c0_16, %c0_17] : memref<128x128xbf16, #tpu.memory_space<vmem>>, vector<128x128xbf16>
      tpu.vector_store %arg6[%c0_16, %c0_17], %25 {strides = array<i32>} : memref<128x128xbf16, #tpu.memory_space<vmem>>, vector<128x128xbf16>,
    } else {
    }
    return
  }
  func.func @transform_0(%arg0: i32, %arg1: i32) -> (i32, i32) {
    %c0_i32 = arith.constant 0 : i32
    %c0_i32_0 = arith.constant 0 : i32
    return %arg0, %c0_i32 : i32, i32
  }
  func.func @transform_1(%arg0: i32, %arg1: i32) -> (i32, i32) {
    %c0_i32 = arith.constant 0 : i32
    %c0_i32_0 = arith.constant 0 : i32
    return %arg1, %c0_i32 : i32, i32
  }
  func.func @transform_2(%arg0: i32, %arg1: i32) -> (i32, i32) {
    %c0_i32 = arith.constant 0 : i32
    %c0_i32_0 = arith.constant 0 : i32
    return %arg1, %c0_i32 : i32, i32
  }
  func.func @transform_3(%arg0: i32, %arg1: i32) -> (i32, i32) {
    %c0_i32 = arith.constant 0 : i32
    %c0_i32_0 = arith.constant 0 : i32
    return %c0_i32, %arg1 : i32, i32
  }
  func.func @transform_4(%arg0: i32, %arg1: i32) -> (i32, i32) {
    %c0_i32 = arith.constant 0 : i32
    %c0_i32_0 = arith.constant 0 : i32
    return %arg0, %c0_i32 : i32, i32
  }
}

</mosaic_0001>

<llo_original>
// kernel: feed_forward_pallas.1
$region0: #{feed_forward_pallas.1}
  #allocation0 [shape = 'u32[]', space=smem, size = 0x4, offset = 0x4, fixed_abs, tag = 'smem constant byte address 0x4 - core index']
  #allocation1 [shape = 'u32[144,128]{1,0:T(1,128)}', space=vmem, size = 0x12000, scoped, tag = 'internal scratch']
  #allocation2 [shape = 'f32[128,128]{1,0:T(8,128)}', space=vmem, size = 0x10000, scoped, tag = 'scratch operand']
  %s0 = inlined_call_operand.vmem [shape: bf16[128,128], index: 0, kind: input, shape index: {}]
  %s1 = inlined_call_operand.vmem [shape: bf16[512,128], index: 1, kind: input, shape index: {}]
  %s2 = inlined_call_operand.vmem [shape: bf16[512,128], index: 2, kind: input, shape index: {}]
  %s3 = inlined_call_operand.vmem [shape: bf16[128,512], index: 3, kind: input, shape index: {}]
  %s4 = inlined_call_operand.hbm [shape: bf16[128,128], index: 4, kind: output, shape index: {}]
  %s5 = sld [smem:[#allocation0]]
  $region99: #{feed_forward_pallas.1} parent=0
    _
  %s7 = ssub.s32 1, %s5
  %s8 = scalar_select 0, %s7, %s5
  $region1: #{feed_forward_pallas.1} parent=0
    #allocation3 [shape = 'u8[131072]{0}', space=vmem, size = 0x20000, scoped, tag = 'input window, operand 3']
    #allocation4 [shape = 'u8[32768]{0}', space=vmem, size = 0x8000, scoped, tag = 'output window, operand 0, single buffered']
    #allocation5 [shape = 's32[2]{0}', space=sflag, size = 0x8, scoped, tag = 'scoped memory for feed_forward_pallas.1']
    %9 = vsyncpa [#allocation5], 0
    loop: start=0, step=1, limit=4
    $region2: #{feed_forward_pallas.1} parent=1 // loop_pre_header
      _
    $region3: #{feed_forward_pallas.1} parent=1 // loop_header
      %s11 = sphi 0, %s15
      %p12 = scmp.ge.s32.totalorder %s11, 4
      %s18 = sphi 0, %s30
      %s19 = sphi 0, %s26
      %s20 = sphi 0, %s18
      %s21 = sphi 0, %s19
      %s22 = sphi 0, %s20
      %s23 = sphi 0, %s21
      %s33 = sphi 0, %s35
      %s36 = sphi 0, %s33
      %s37 = sphi 0, %s36
      %s53 = sphi 0, %s37
      %s59 = sphi 0, %s61
      %s62 = sphi 0, %s59
      %s63 = sphi 0, %s62
      %s79 = sphi 0, %s63
      %s85 = sphi 0, %s87
      %s88 = sphi 0, %s85
      %s89 = sphi 0, %s88
      %s105 = sphi 0, %s89
      %s111 = sphi 0, %s113
      %s114 = sphi 0, %s111
      %s115 = sphi 0, %s114
      %s131 = sphi 0, %s115
      %s137 = sphi 0, %s139
      %s140 = sphi 0, %s137
      %s141 = sphi 0, %s140
      %s157 = sphi 0, %s141
    $region4: #{feed_forward_pallas.1} parent=1 // loop_header_branch
      %14 = sbr.rel (%p12) target = $region8
    $region5: #{feed_forward_pallas.1} parent=1 // loop_body
      %s16 = ssub.s32 %s11, 1
      %s17 = ssub.s32 %s11, 2
      %s24 = sadd.s32 1, %s19
      %p25 = scmp.ge.s32.totalorder %s24, 2
      %s26 = scalar_select %p25, 0, %s24
      %s27 = sadd.s32 1, %s18
      %s28 = scalar_select %p25, %s27, %s18
      %p29 = scmp.ge.s32.totalorder %s28, 1
      %s30 = scalar_select %p29, 0, %s28
      %s31 = ssub.s32 %s18, %s30
      %p32 = scmp.eq.s32.totalorder %s31, 0
      %s34 = sadd.s32 %s33, 1
      %s35 = scalar_select %p32, %s33, %s34
      %p38 = pneg %p32
      %p39 = scmp.eq.s32.totalorder %s11, 1
      %p40 = por %p38, %p39
      %p41 = scmp.ne.s32.totalorder %s33, %s36
      %p42 = scmp.eq.s32.totalorder %s11, 0
      %p43 = por %p41, %p42
      %p44 = scmp.ne.s32.totalorder %s33, %s36
      %p45 = scmp.eq.s32.totalorder %s16, 1
      %p46 = por %p44, %p45
      %p47 = scmp.ne.s32.totalorder %s36, %s37
      %p48 = scmp.eq.s32.totalorder %s16, 0
      %p49 = por %p47, %p48
      %p50 = scmp.ne.s32.totalorder %s36, %s37
      %p51 = scmp.eq.s32.totalorder %s17, 1
      %p52 = por %p50, %p51
      %p54 = scmp.ne.s32.totalorder %s37, %s53
      %p55 = scmp.eq.s32.totalorder %s17, 0
      %p56 = por %p54, %p55
      %s57 = ssub.s32 %s19, %s26
      %p58 = scmp.eq.s32.totalorder %s57, 0
      %s60 = sadd.s32 %s59, 1
      %s61 = scalar_select %p58, %s59, %s60
      %p64 = pneg %p58
      %p65 = scmp.eq.s32.totalorder %s11, 1
      %p66 = por %p64, %p65
      %p67 = scmp.ne.s32.totalorder %s59, %s62
      %p68 = scmp.eq.s32.totalorder %s11, 0
      %p69 = por %p67, %p68
      %p70 = scmp.ne.s32.totalorder %s59, %s62
      %p71 = scmp.eq.s32.totalorder %s16, 1
      %p72 = por %p70, %p71
      %p73 = scmp.ne.s32.totalorder %s62, %s63
      %p74 = scmp.eq.s32.totalorder %s16, 0
      %p75 = por %p73, %p74
      %p76 = scmp.ne.s32.totalorder %s62, %s63
      %p77 = scmp.eq.s32.totalorder %s17, 1
      %p78 = por %p76, %p77
      %p80 = scmp.ne.s32.totalorder %s63, %s79
      %p81 = scmp.eq.s32.totalorder %s17, 0
      %p82 = por %p80, %p81
      %s83 = ssub.s32 %s19, %s26
      %p84 = scmp.eq.s32.totalorder %s83, 0
      %s86 = sadd.s32 %s85, 1
      %s87 = scalar_select %p84, %s85, %s86
      %p90 = pneg %p84
      %p91 = scmp.eq.s32.totalorder %s11, 1
      %p92 = por %p90, %p91
      %p93 = scmp.ne.s32.totalorder %s85, %s88
      %p94 = scmp.eq.s32.totalorder %s11, 0
      %p95 = por %p93, %p94
      %p96 = scmp.ne.s32.totalorder %s85, %s88
      %p97 = scmp.eq.s32.totalorder %s16, 1
      %p98 = por %p96, %p97
      %p99 = scmp.ne.s32.totalorder %s88, %s89
      %p100 = scmp.eq.s32.totalorder %s16, 0
      %p101 = por %p99, %p100
      %p102 = scmp.ne.s32.totalorder %s88, %s89
      %p103 = scmp.eq.s32.totalorder %s17, 1
      %p104 = por %p102, %p103
      %p106 = scmp.ne.s32.totalorder %s89, %s105
      %p107 = scmp.eq.s32.totalorder %s17, 0
      %p108 = por %p106, %p107
      %s109 = ssub.s32 %s19, %s26
      %p110 = scmp.eq.s32.totalorder %s109, 0
      %s112 = sadd.s32 %s111, 1
      %s113 = scalar_select %p110, %s111, %s112
      %p116 = pneg %p110
      %p117 = scmp.eq.s32.totalorder %s11, 1
      %p118 = por %p116, %p117
      %p119 = scmp.ne.s32.totalorder %s111, %s114
      %p120 = scmp.eq.s32.totalorder %s11, 0
      %p121 = por %p119, %p120
      %p122 = scmp.ne.s32.totalorder %s111, %s114
      %p123 = scmp.eq.s32.totalorder %s16, 1
      %p124 = por %p122, %p123
      %p125 = scmp.ne.s32.totalorder %s114, %s115
      %p126 = scmp.eq.s32.totalorder %s16, 0
      %p127 = por %p125, %p126
      %p128 = scmp.ne.s32.totalorder %s114, %s115
      %p129 = scmp.eq.s32.totalorder %s17, 1
      %p130 = por %p128, %p129
      %p132 = scmp.ne.s32.totalorder %s115, %s131
      %p133 = scmp.eq.s32.totalorder %s17, 0
      %p134 = por %p132, %p133
      %s135 = ssub.s32 %s18, %s30
      %p136 = scmp.eq.s32.totalorder %s135, 0
      %s138 = sadd.s32 %s137, 1
      %s139 = scalar_select %p136, %s137, %s138
      %p142 = pneg %p136
      %p143 = scmp.eq.s32.totalorder %s11, 1
      %p144 = por %p142, %p143
      %p145 = scmp.ne.s32.totalorder %s137, %s140
      %p146 = scmp.eq.s32.totalorder %s11, 0
      %p147 = por %p145, %p146
      %p148 = scmp.ne.s32.totalorder %s137, %s140
      %p149 = scmp.eq.s32.totalorder %s16, 1
      %p150 = por %p148, %p149
      %p151 = scmp.ne.s32.totalorder %s140, %s141
      %p152 = scmp.eq.s32.totalorder %s16, 0
      %p153 = por %p151, %p152
      %p154 = scmp.ne.s32.totalorder %s140, %s141
      %p155 = scmp.eq.s32.totalorder %s17, 1
      %p156 = por %p154, %p155
      %p158 = scmp.ne.s32.totalorder %s141, %s157
      %p159 = scmp.eq.s32.totalorder %s17, 0
      %p160 = por %p158, %p159
      %p161 = scmp.le.s32.totalorder 1, %s11
      %p162 = scmp.lt.s32.totalorder %s11, 3
      %p163 = pnand %p161, %p162
      %p164 = pneg %p163
      // Predicated region
      $region9: #{feed_forward_pallas.1} parent=5 // pred_check
        _
      $region10: #{feed_forward_pallas.1} parent=5 // pred_check_branch
        %166 = sbr.rel (%p163) target = $region12
      $region11: #{feed_forward_pallas.1} parent=5 // pred_region
        %s167 = ssub.s32 %s11, 1
        // Predicated region
        $region13: #{feed_forward_pallas.1} parent=11 // pred_check
          %p168 = pneg %p49
        $region14: #{feed_forward_pallas.1} parent=11 // pred_check_branch
          %170 = sbr.rel (%p168) target = $region16
        $region15: #{feed_forward_pallas.1} parent=11 // pred_region
          %s171 = smul.u32 16, %s20
          %p172 = scmp.lt.s32.totalorder %s171, 15
          %s173 = scalar_select %p172, %s171, 15
          %s174 = smul.addr %s173, 4
          %s175 = scalar_lea.vmem %s0, %s174
          %s176 = smul.u32 16, %s20
        $region16: #{feed_forward_pallas.1} parent=11 // pred_fallthru
          _
      $region12: #{feed_forward_pallas.1} parent=5 // pred_fallthru
        _
      %p177 = scmp.lt.s32.totalorder %s11, 2
      // Predicated region
      $region17: #{feed_forward_pallas.1} parent=5 // pred_check
        %p178 = pneg %p177
      $region18: #{feed_forward_pallas.1} parent=5 // pred_check_branch
        %180 = sbr.rel (%p178) target = $region20
      $region19: #{feed_forward_pallas.1} parent=5 // pred_region
        // Predicated region
        $region21: #{feed_forward_pallas.1} parent=19 // pred_check
          %p181 = pneg %p69
        $region22: #{feed_forward_pallas.1} parent=19 // pred_check_branch
          %183 = sbr.rel (%p181) target = $region24
        $region23: #{feed_forward_pallas.1} parent=19 // pred_region
          %s184 = smul.u32 32, %s19
          %p185 = scmp.lt.s32.totalorder %s184, 63
          %s186 = scalar_select %p185, %s184, 63
          %s187 = smul.addr %s186, 4
          %s188 = scalar_lea.vmem %s1, %s187
          %s189 = smul.u32 32, %s19
        $region24: #{feed_forward_pallas.1} parent=19 // pred_fallthru
          _
        // Predicated region
        $region25: #{feed_forward_pallas.1} parent=19 // pred_check
          %p190 = pneg %p95
        $region26: #{feed_forward_pallas.1} parent=19 // pred_check_branch
          %192 = sbr.rel (%p190) target = $region28
        $region27: #{feed_forward_pallas.1} parent=19 // pred_region
          %s193 = smul.u32 32, %s19
          %p194 = scmp.lt.s32.totalorder %s193, 63
          %s195 = scalar_select %p194, %s193, 63
          %s196 = smul.addr %s195, 4
          %s197 = scalar_lea.vmem %s2, %s196
          %s198 = smul.u32 32, %s19
        $region28: #{feed_forward_pallas.1} parent=19 // pred_fallthru
          _
        // Predicated region
        $region29: #{feed_forward_pallas.1} parent=19 // pred_check
          %p199 = pneg %p121
        $region30: #{feed_forward_pallas.1} parent=19 // pred_check_branch
          %201 = sbr.rel (%p199) target = $region32
        $region31: #{feed_forward_pallas.1} parent=19 // pred_region
          %s202 = sand.u32 %s111, 1
          %s203 = sand.u32 %s111, 1
          %s204 = smul.addr %s203, 128
          %s205 = scalar_lea.vmem [#allocation3], %s204
          %s206 = smul.u32 2, %s19
          %s207 = smul.addr %s206, 4
          %s208 = scalar_lea.vmem %s3, %s207
          // Predicated region
          $region33: #{feed_forward_pallas.1} parent=31 // pred_check
            _
          $region34: #{feed_forward_pallas.1} parent=31 // pred_check_branch
            %210 = sbr.rel (0) target = $region36
          $region35: #{feed_forward_pallas.1} parent=31 // pred_region
            // Predicated region
            $region37: #{feed_forward_pallas.1} parent=35 // pred_check
              _
            $region38: #{feed_forward_pallas.1} parent=35 // pred_check_branch
              %212 = sbr.rel (0) target = $region40
            $region39: #{feed_forward_pallas.1} parent=35 // pred_region
              // Predicated region
              $region52: #{feed_forward_pallas.1} parent=39 // pred_check
                _
              $region53: #{feed_forward_pallas.1} parent=39 // pred_check_branch
                %257 = sbr.rel (0) target = $region55
              $region54: #{feed_forward_pallas.1} parent=39 // pred_region
                loop: start=0, step=1, limit=1
                $region56: #{feed_forward_pallas.1} parent=54 // loop_pre_header
                  _
                $region57: #{feed_forward_pallas.1} parent=54 // loop_header
                  %s259 = sphi 0, %s263
                  %p260 = scmp.ge.s32.totalorder %s259, 1
                  %s264 = sphi %s208, %s208
                  %s265 = sphi %s205, %s205
                $region58: #{feed_forward_pallas.1} parent=54 // loop_header_branch
                  %262 = sbr.rel (%p260) target = $region62
                $region59: #{feed_forward_pallas.1} parent=54 // loop_body
                  %v266 = vld [vmem:[%s264] sm:$0xff]
                  %267 = vst [vmem:[%s265] sm:$0xff] %v266
                  %v268 = vld [vmem:[%s264 + $0x10] sm:$0xff]
                  %269 = vst [vmem:[%s265 + $0x8] sm:$0xff] %v268
                  %v270 = vld [vmem:[%s264 + $0x20] sm:$0xff]
                  %271 = vst [vmem:[%s265 + $0x10] sm:$0xff] %v270
                  %v272 = vld [vmem:[%s264 + $0x30] sm:$0xff]
                  %273 = vst [vmem:[%s265 + $0x18] sm:$0xff] %v272
                  %v274 = vld [vmem:[%s264 + $0x40] sm:$0xff]
                  %275 = vst [vmem:[%s265 + $0x20] sm:$0xff] %v274
                  %v276 = vld [vmem:[%s264 + $0x50] sm:$0xff]
                  %277 = vst [vmem:[%s265 + $0x28] sm:$0xff] %v276
                  %v278 = vld [vmem:[%s264 + $0x60] sm:$0xff]
                  %279 = vst [vmem:[%s265 + $0x30] sm:$0xff] %v278
                  %v280 = vld [vmem:[%s264 + $0x70] sm:$0xff]
                  %281 = vst [vmem:[%s265 + $0x38] sm:$0xff] %v280
                  %v282 = vld [vmem:[%s264 + $0x80] sm:$0xff]
                  %283 = vst [vmem:[%s265 + $0x40] sm:$0xff] %v282
                  %v284 = vld [vmem:[%s264 + $0x90] sm:$0xff]
                  %285 = vst [vmem:[%s265 + $0x48] sm:$0xff] %v284
                  %v286 = vld [vmem:[%s264 + $0xa0] sm:$0xff]
                  %287 = vst [vmem:[%s265 + $0x50] sm:$0xff] %v286
                  %v288 = vld [vmem:[%s264 + $0xb0] sm:$0xff]
                  %289 = vst [vmem:[%s265 + $0x58] sm:$0xff] %v288
                  %v290 = vld [vmem:[%s264 + $0xc0] sm:$0xff]
                  %291 = vst [vmem:[%s265 + $0x60] sm:$0xff] %v290
                  %v292 = vld [vmem:[%s264 + $0xd0] sm:$0xff]
                  %293 = vst [vmem:[%s265 + $0x68] sm:$0xff] %v292
                  %v294 = vld [vmem:[%s264 + $0xe0] sm:$0xff]
                  %295 = vst [vmem:[%s265 + $0x70] sm:$0xff] %v294
                  %v296 = vld [vmem:[%s264 + $0xf0] sm:$0xff]
                  %297 = vst [vmem:[%s265 + $0x78] sm:$0xff] %v296
                $region60: #{feed_forward_pallas.1} parent=54 // loop_footer
                  %s263 = sadd.s32 1, %s259
                $region61: #{feed_forward_pallas.1} parent=54 // loop_footer_branch
                  %258 = sbr.rel target = $region57
                $region62: #{feed_forward_pallas.1} parent=54 // loop_exit
                  _
              $region55: #{feed_forward_pallas.1} parent=39 // pred_fallthru
                _
              // Predicated region
              $region63: #{feed_forward_pallas.1} parent=39 // pred_check
                _
              $region64: #{feed_forward_pallas.1} parent=39 // pred_check_branch
                %299 = sbr.rel target = $region66
              $region65: #{feed_forward_pallas.1} parent=39 // pred_region
                _
              $region66: #{feed_forward_pallas.1} parent=39 // pred_fallthru
                _
            $region40: #{feed_forward_pallas.1} parent=35 // pred_fallthru
              _
            // Predicated region
            $region41: #{feed_forward_pallas.1} parent=35 // pred_check
              _
            $region42: #{feed_forward_pallas.1} parent=35 // pred_check_branch
              %214 = sbr.rel target = $region44
            $region43: #{feed_forward_pallas.1} parent=35 // pred_region
              loop: start=0, step=1, limit=1
              $region45: #{feed_forward_pallas.1} parent=43 // loop_pre_header
                _
              $region46: #{feed_forward_pallas.1} parent=43 // loop_header
                %s217 = sphi 0, %s221
                %p218 = scmp.ge.s32.totalorder %s217, 1
                %s222 = sphi %s208, %s208
                %s223 = sphi %s205, %s205
              $region47: #{feed_forward_pallas.1} parent=43 // loop_header_branch
                %220 = sbr.rel (%p218) target = $region51
              $region48: #{feed_forward_pallas.1} parent=43 // loop_body
                %v224 = vld [vmem:[%s222] sm:$0xff]
                %225 = vst [vmem:[%s223] sm:$0xff] %v224
                %v226 = vld [vmem:[%s222 + $0x10] sm:$0xff]
                %227 = vst [vmem:[%s223 + $0x8] sm:$0xff] %v226
                %v228 = vld [vmem:[%s222 + $0x20] sm:$0xff]
                %229 = vst [vmem:[%s223 + $0x10] sm:$0xff] %v228
                %v230 = vld [vmem:[%s222 + $0x30] sm:$0xff]
                %231 = vst [vmem:[%s223 + $0x18] sm:$0xff] %v230
                %v232 = vld [vmem:[%s222 + $0x40] sm:$0xff]
                %233 = vst [vmem:[%s223 + $0x20] sm:$0xff] %v232
                %v234 = vld [vmem:[%s222 + $0x50] sm:$0xff]
                %235 = vst [vmem:[%s223 + $0x28] sm:$0xff] %v234
                %v236 = vld [vmem:[%s222 + $0x60] sm:$0xff]
                %237 = vst [vmem:[%s223 + $0x30] sm:$0xff] %v236
                %v238 = vld [vmem:[%s222 + $0x70] sm:$0xff]
                %239 = vst [vmem:[%s223 + $0x38] sm:$0xff] %v238
                %v240 = vld [vmem:[%s222 + $0x80] sm:$0xff]
                %241 = vst [vmem:[%s223 + $0x40] sm:$0xff] %v240
                %v242 = vld [vmem:[%s222 + $0x90] sm:$0xff]
                %243 = vst [vmem:[%s223 + $0x48] sm:$0xff] %v242
                %v244 = vld [vmem:[%s222 + $0xa0] sm:$0xff]
                %245 = vst [vmem:[%s223 + $0x50] sm:$0xff] %v244
                %v246 = vld [vmem:[%s222 + $0xb0] sm:$0xff]
                %247 = vst [vmem:[%s223 + $0x58] sm:$0xff] %v246
                %v248 = vld [vmem:[%s222 + $0xc0] sm:$0xff]
                %249 = vst [vmem:[%s223 + $0x60] sm:$0xff] %v248
                %v250 = vld [vmem:[%s222 + $0xd0] sm:$0xff]
                %251 = vst [vmem:[%s223 + $0x68] sm:$0xff] %v250
                %v252 = vld [vmem:[%s222 + $0xe0] sm:$0xff]
                %253 = vst [vmem:[%s223 + $0x70] sm:$0xff] %v252
                %v254 = vld [vmem:[%s222 + $0xf0] sm:$0xff]
                %255 = vst [vmem:[%s223 + $0x78] sm:$0xff] %v254
              $region49: #{feed_forward_pallas.1} parent=43 // loop_footer
                %s221 = sadd.s32 1, %s217
              $region50: #{feed_forward_pallas.1} parent=43 // loop_footer_branch
                %216 = sbr.rel target = $region46
              $region51: #{feed_forward_pallas.1} parent=43 // loop_exit
                _
            $region44: #{feed_forward_pallas.1} parent=35 // pred_fallthru
              _
          $region36: #{feed_forward_pallas.1} parent=31 // pred_fallthru
            _
          %300 = vnop
        $region32: #{feed_forward_pallas.1} parent=19 // pred_fallthru
          _
      $region20: #{feed_forward_pallas.1} parent=5 // pred_fallthru
        _
      %p301 = scmp.le.s32.totalorder 1, %s11
      %p302 = scmp.lt.s32.totalorder %s11, 3
      %p303 = pnand %p301, %p302
      %p304 = pneg %p303
      // Predicated region
      $region67: #{feed_forward_pallas.1} parent=5 // pred_check
        _
      $region68: #{feed_forward_pallas.1} parent=5 // pred_check_branch
        %306 = sbr.rel (%p303) target = $region70
      $region69: #{feed_forward_pallas.1} parent=5 // pred_region
        %s307 = ssub.s32 %s11, 1
        %s308 = sand.u32 %s114, 1
        %s309 = sand.u32 %s114, 1
        %s310 = smul.addr %s309, 128
        %s311 = scalar_lea.vmem [#allocation3], %s310
        // Predicated region
        $region71: #{feed_forward_pallas.1} parent=69 // pred_check
          %p312 = pneg %p127
        $region72: #{feed_forward_pallas.1} parent=69 // pred_check_branch
          %314 = sbr.rel (%p312) target = $region74
        $region73: #{feed_forward_pallas.1} parent=69 // pred_region
          _
        $region74: #{feed_forward_pallas.1} parent=69 // pred_fallthru
          _
        %s315 = smul.u32 16, %s20
        %p316 = scmp.lt.s32.totalorder %s315, 15
        %s317 = scalar_select %p316, %s315, 15
        %s318 = smul.addr %s317, 4
        %s319 = scalar_lea.vmem %s0, %s318
        %p320 = pneg %p49
        %p321 = pneg %p46
        %s322 = smul.u32 32, %s21
        %p323 = scmp.lt.s32.totalorder %s322, 63
        %s324 = scalar_select %p323, %s322, 63
        %s325 = smul.addr %s324, 4
        %s326 = scalar_lea.vmem %s1, %s325
        %p327 = pneg %p75
        %p328 = pneg %p72
        %s329 = smul.u32 32, %s21
        %p330 = scmp.lt.s32.totalorder %s329, 63
        %s331 = scalar_select %p330, %s329, 63
        %s332 = smul.addr %s331, 4
        %s333 = scalar_lea.vmem %s2, %s332
        %p334 = pneg %p101
        %p335 = pneg %p98
        %s336 = sand.u32 %s114, 1
        %s337 = sand.u32 %s114, 1
        %s338 = smul.addr %s337, 128
        %s339 = scalar_lea.vmem [#allocation3], %s338
        %p340 = pneg %p127
        %p341 = pneg %p124
        %p342 = pneg %p153
        %p343 = pneg %p150
        %s344 = smul.u32 16, %s20
        %p345 = scmp.lt.s32.totalorder %s344, 15
        %s346 = scalar_select %p345, %s344, 15
        %s347 = smul.addr %s346, 4
        %s348 = scalar_lea.vmem %s0, %s347
        %s349 = smul.u32 16, %s20
        %s350 = smul.u32 32, %s21
        %p351 = scmp.lt.s32.totalorder %s350, 63
        %s352 = scalar_select %p351, %s350, 63
        %s353 = smul.addr %s352, 4
        %s354 = scalar_lea.vmem %s1, %s353
        %s355 = smul.u32 32, %s21
        %s356 = smul.u32 32, %s21
        %p357 = scmp.lt.s32.totalorder %s356, 63
        %s358 = scalar_select %p357, %s356, 63
        %s359 = smul.addr %s358, 4
        %s360 = scalar_lea.vmem %s2, %s359
        %s361 = smul.u32 32, %s21
        %s362 = smul.u32 2, %s21
        %s363 = smul.u32 16, %s20
        %v365 = vld [vmem:[%s348] sm:$0xf]
        %v366 = vld [vmem:[%s348 + $0x4] sm:$0xf]
        %v367 = vld [vmem:[%s348 + $0x8] sm:$0xf]
        %v368 = vld [vmem:[%s348 + $0xc] sm:$0xf]
        %v369 = vld [vmem:[%s348 + $0x10] sm:$0xf]
        %v370 = vld [vmem:[%s348 + $0x14] sm:$0xf]
        %v371 = vld [vmem:[%s348 + $0x18] sm:$0xf]
        %v372 = vld [vmem:[%s348 + $0x1c] sm:$0xf]
        %v373 = vld [vmem:[%s348 + $0x20] sm:$0xf]
        %v374 = vld [vmem:[%s348 + $0x24] sm:$0xf]
        %v375 = vld [vmem:[%s348 + $0x28] sm:$0xf]
        %v376 = vld [vmem:[%s348 + $0x2c] sm:$0xf]
        %v377 = vld [vmem:[%s348 + $0x30] sm:$0xf]
        %v378 = vld [vmem:[%s348 + $0x34] sm:$0xf]
        %v379 = vld [vmem:[%s348 + $0x38] sm:$0xf]
        %v380 = vld [vmem:[%s348 + $0x3c] sm:$0xf]
        %v381 = vld [vmem:[%s354] sm:$0xf]
        %v382 = vld [vmem:[%s354 + $0x4] sm:$0xf]
        %v383 = vld [vmem:[%s354 + $0x8] sm:$0xf]
        %v384 = vld [vmem:[%s354 + $0xc] sm:$0xf]
        %v385 = vld [vmem:[%s354 + $0x10] sm:$0xf]
        %v386 = vld [vmem:[%s354 + $0x14] sm:$0xf]
        %v387 = vld [vmem:[%s354 + $0x18] sm:$0xf]
        %v388 = vld [vmem:[%s354 + $0x1c] sm:$0xf]
        %v389 = vld [vmem:[%s354 + $0x20] sm:$0xf]
        %v390 = vld [vmem:[%s354 + $0x24] sm:$0xf]
        %v391 = vld [vmem:[%s354 + $0x28] sm:$0xf]
        %v392 = vld [vmem:[%s354 + $0x2c] sm:$0xf]
        %v393 = vld [vmem:[%s354 + $0x30] sm:$0xf]
        %v394 = vld [vmem:[%s354 + $0x34] sm:$0xf]
        %v395 = vld [vmem:[%s354 + $0x38] sm:$0xf]
        %v396 = vld [vmem:[%s354 + $0x3c] sm:$0xf]
        %v397 = vld [vmem:[%s354 + $0x40] sm:$0xf]
        %v398 = vld [vmem:[%s354 + $0x44] sm:$0xf]
        %v399 = vld [vmem:[%s354 + $0x48] sm:$0xf]
        %v400 = vld [vmem:[%s354 + $0x4c] sm:$0xf]
        %v401 = vld [vmem:[%s354 + $0x50] sm:$0xf]
        %v402 = vld [vmem:[%s354 + $0x54] sm:$0xf]
        %v403 = vld [vmem:[%s354 + $0x58] sm:$0xf]
        %v404 = vld [vmem:[%s354 + $0x5c] sm:$0xf]
        %v405 = vld [vmem:[%s354 + $0x60] sm:$0xf]
        %v406 = vld [vmem:[%s354 + $0x64] sm:$0xf]
        %v407 = vld [vmem:[%s354 + $0x68] sm:$0xf]
        %v408 = vld [vmem:[%s354 + $0x6c] sm:$0xf]
        %v409 = vld [vmem:[%s354 + $0x70] sm:$0xf]
        %v410 = vld [vmem:[%s354 + $0x74] sm:$0xf]
        %v411 = vld [vmem:[%s354 + $0x78] sm:$0xf]
        %v412 = vld [vmem:[%s354 + $0x7c] sm:$0xf]
        %v429 = vunpack.c.l.b16 %v365
        %v430 = vunpack.c.l.b16 %v366
        %v431 = vunpack.c.l.b16 %v367
        %v432 = vunpack.c.l.b16 %v368
        %v433 = vunpack.c.l.b16 %v369
        %v434 = vunpack.c.l.b16 %v370
        %v435 = vunpack.c.l.b16 %v371
        %v436 = vunpack.c.l.b16 %v372
        %v437 = vunpack.c.l.b16 %v373
        %v438 = vunpack.c.l.b16 %v374
        %v439 = vunpack.c.l.b16 %v375
        %v440 = vunpack.c.l.b16 %v376
        %v441 = vunpack.c.l.b16 %v377
        %v442 = vunpack.c.l.b16 %v378
        %v443 = vunpack.c.l.b16 %v379
        %v444 = vunpack.c.l.b16 %v380
        %v445 = vpack.c.b16 %v430, %v429
        %v446 = vpack.c.b16 %v432, %v431
        %v447 = vpack.c.b16 %v434, %v433
        %v448 = vpack.c.b16 %v436, %v435
        %v449 = vpack.c.b16 %v438, %v437
        %v450 = vpack.c.b16 %v440, %v439
        %v451 = vpack.c.b16 %v442, %v441
        %v452 = vpack.c.b16 %v444, %v443
        %v493 = vunpack.c.l.b16 %v381
        %v494 = vunpack.c.l.b16 %v382
        %v495 = vunpack.c.l.b16 %v383
        %v496 = vunpack.c.l.b16 %v384
        %v497 = vunpack.c.l.b16 %v385
        %v498 = vunpack.c.l.b16 %v386
        %v499 = vunpack.c.l.b16 %v387
        %v500 = vunpack.c.l.b16 %v388
        %v501 = vunpack.c.l.b16 %v389
        %v502 = vunpack.c.l.b16 %v390
        %v503 = vunpack.c.l.b16 %v391
        %v504 = vunpack.c.l.b16 %v392
        %v505 = vunpack.c.l.b16 %v393
        %v506 = vunpack.c.l.b16 %v394
        %v507 = vunpack.c.l.b16 %v395
        %v508 = vunpack.c.l.b16 %v396
        %v509 = vunpack.c.l.b16 %v397
        %v510 = vunpack.c.l.b16 %v398
        %v511 = vunpack.c.l.b16 %v399
        %v512 = vunpack.c.l.b16 %v400
        %v513 = vunpack.c.l.b16 %v401
        %v514 = vunpack.c.l.b16 %v402
        %v515 = vunpack.c.l.b16 %v403
        %v516 = vunpack.c.l.b16 %v404
        %v517 = vunpack.c.l.b16 %v405
        %v518 = vunpack.c.l.b16 %v406
        %v519 = vunpack.c.l.b16 %v407
        %v520 = vunpack.c.l.b16 %v408
        %v521 = vunpack.c.l.b16 %v409
        %v522 = vunpack.c.l.b16 %v410
        %v523 = vunpack.c.l.b16 %v411
        %v524 = vunpack.c.l.b16 %v412
        %v525 = vpack.c.b16 %v494, %v493
        %v526 = vpack.c.b16 %v496, %v495
        %v527 = vpack.c.b16 %v498, %v497
        %v528 = vpack.c.b16 %v500, %v499
        %v529 = vpack.c.b16 %v502, %v501
        %v530 = vpack.c.b16 %v504, %v503
        %v531 = vpack.c.b16 %v506, %v505
        %v532 = vpack.c.b16 %v508, %v507
        %v533 = vpack.c.b16 %v510, %v509
        %v534 = vpack.c.b16 %v512, %v511
        %v535 = vpack.c.b16 %v514, %v513
        %v536 = vpack.c.b16 %v516, %v515
        %v537 = vpack.c.b16 %v518, %v517
        %v538 = vpack.c.b16 %v520, %v519
        %v539 = vpack.c.b16 %v522, %v521
        %v540 = vpack.c.b16 %v524, %v523
        %557 = vmatprep.subr.bf16.mxu0 0
        %558 = vmatpush1.bf16.xpose.msra.mxu0 %v525
        %559 = vmatprep.subr.bf16.mxu0 0
        %560 = vmatpush1.bf16.xpose.msra.mxu0 %v526
        %561 = vmatprep.subr.bf16.mxu0 0
        %562 = vmatpush1.bf16.xpose.msra.mxu0 %v527
        %563 = vmatprep.subr.bf16.mxu0 0
        %564 = vmatpush1.bf16.xpose.msra.mxu0 %v528
        %565 = vmatprep.subr.bf16.mxu0 0
        %566 = vmatpush1.bf16.xpose.msra.mxu0 %v529
        %567 = vmatprep.subr.bf16.mxu0 0
        %568 = vmatpush1.bf16.xpose.msra.mxu0 %v530
        %569 = vmatprep.subr.bf16.mxu0 0
        %570 = vmatpush1.bf16.xpose.msra.mxu0 %v531
        %571 = vmatprep.subr.bf16.mxu0 0
        %572 = vmatpush1.bf16.xpose.msra.mxu0 %v532
        %573 = vmatprep.subr.bf16.mxu0 0
        %574 = vmatpush1.bf16.xpose.msra.mxu0 %v533
        %575 = vmatprep.subr.bf16.mxu0 0
        %576 = vmatpush1.bf16.xpose.msra.mxu0 %v534
        %577 = vmatprep.subr.bf16.mxu0 0
        %578 = vmatpush1.bf16.xpose.msra.mxu0 %v535
        %579 = vmatprep.subr.bf16.mxu0 0
        %580 = vmatpush1.bf16.xpose.msra.mxu0 %v536
        %581 = vmatprep.subr.bf16.mxu0 0
        %582 = vmatpush1.bf16.xpose.msra.mxu0 %v537
        %583 = vmatprep.subr.bf16.mxu0 0
        %584 = vmatpush1.bf16.xpose.msra.mxu0 %v538
        %585 = vmatprep.subr.bf16.mxu0 0
        %586 = vmatpush1.bf16.xpose.msra.mxu0 %v539
        %587 = vmatprep.subr.bf16.mxu0 0
        %588 = vmatpush1.bf16.xpose.msra.mxu0 %v540
        %589 = vmatprep.mubr.bf16.mxu0 0
        %590 = vmatmul.mubr.bf16.gmra.mrb[0].mxu0 %v445
        %v591 = vpop.f32.mrb[0].mxu0
        %v592 = vadd.f32 0.0, %v591
        %v593 = vpop.f32.mrb[0].mxu0
        %v594 = vadd.f32 0.0, %v593
        %v595 = vpop.f32.mrb[0].mxu0
        %v596 = vadd.f32 0.0, %v595
        %v597 = vpop.f32.mrb[0].mxu0
        %v598 = vadd.f32 0.0, %v597
        %599 = vmatprep.mubr.bf16.mxu0 0
        %600 = vmatmul.mubr.bf16.gmra.mrb[0].mxu0 %v446
        %v601 = vpop.f32.mrb[0].mxu0
        %v602 = vadd.f32 0.0, %v601
        %v603 = vpop.f32.mrb[0].mxu0
        %v604 = vadd.f32 0.0, %v603
        %v605 = vpop.f32.mrb[0].mxu0
        %v606 = vadd.f32 0.0, %v605
        %v607 = vpop.f32.mrb[0].mxu0
        %v608 = vadd.f32 0.0, %v607
        %609 = vmatprep.mubr.bf16.mxu0 0
        %610 = vmatmul.mubr.bf16.gmra.mrb[0].mxu0 %v447
        %v611 = vpop.f32.mrb[0].mxu0
        %v612 = vadd.f32 0.0, %v611
        %v613 = vpop.f32.mrb[0].mxu0
        %v614 = vadd.f32 0.0, %v613
        %v615 = vpop.f32.mrb[0].mxu0
        %v616 = vadd.f32 0.0, %v615
        %v617 = vpop.f32.mrb[0].mxu0
        %v618 = vadd.f32 0.0, %v617
        %619 = vmatprep.mubr.bf16.mxu0 0
        %620 = vmatmul.mubr.bf16.gmra.mrb[0].mxu0 %v448
        %v621 = vpop.f32.mrb[0].mxu0
        %v622 = vadd.f32 0.0, %v621
        %v623 = vpop.f32.mrb[0].mxu0
        %v624 = vadd.f32 0.0, %v623
        %v625 = vpop.f32.mrb[0].mxu0
        %v626 = vadd.f32 0.0, %v625
        %v627 = vpop.f32.mrb[0].mxu0
        %v628 = vadd.f32 0.0, %v627
        %629 = vmatprep.mubr.bf16.mxu0 0
        %630 = vmatmul.mubr.bf16.gmra.mrb[0].mxu0 %v449
        %v631 = vpop.f32.mrb[0].mxu0
        %v632 = vadd.f32 0.0, %v631
        %v633 = vpop.f32.mrb[0].mxu0
        %v634 = vadd.f32 0.0, %v633
        %v635 = vpop.f32.mrb[0].mxu0
        %v636 = vadd.f32 0.0, %v635
        %v637 = vpop.f32.mrb[0].mxu0
        %v638 = vadd.f32 0.0, %v637
        %639 = vmatprep.mubr.bf16.mxu0 0
        %640 = vmatmul.mubr.bf16.gmra.mrb[0].mxu0 %v450
        %v641 = vpop.f32.mrb[0].mxu0
        %v642 = vadd.f32 0.0, %v641
        %v643 = vpop.f32.mrb[0].mxu0
        %v644 = vadd.f32 0.0, %v643
        %v645 = vpop.f32.mrb[0].mxu0
        %v646 = vadd.f32 0.0, %v645
        %v647 = vpop.f32.mrb[0].mxu0
        %v648 = vadd.f32 0.0, %v647
        %649 = vmatprep.mubr.bf16.mxu0 0
        %650 = vmatmul.mubr.bf16.gmra.mrb[0].mxu0 %v451
        %v651 = vpop.f32.mrb[0].mxu0
        %v652 = vadd.f32 0.0, %v651
        %v653 = vpop.f32.mrb[0].mxu0
        %v654 = vadd.f32 0.0, %v653
        %v655 = vpop.f32.mrb[0].mxu0
        %v656 = vadd.f32 0.0, %v655
        %v657 = vpop.f32.mrb[0].mxu0
        %v658 = vadd.f32 0.0, %v657
        %659 = vmatprep.mubr.bf16.mxu0 0
        %660 = vmatmul.mubr.bf16.gmra.mrb[0].mxu0 %v452
        %v661 = vpop.f32.mrb[0].mxu0
        %v662 = vadd.f32 0.0, %v661
        %v663 = vpop.f32.mrb[0].mxu0
        %v664 = vadd.f32 0.0, %v663
        %v665 = vpop.f32.mrb[0].mxu0
        %v666 = vadd.f32 0.0, %v665
        %v667 = vpop.f32.mrb[0].mxu0
        %v668 = vadd.f32 0.0, %v667
        %669 = vdwg.mxu0
        %v670 = vld [vmem:[%s360] sm:$0xf]
        %v671 = vld [vmem:[%s360 + $0x4] sm:$0xf]
        %v672 = vld [vmem:[%s360 + $0x8] sm:$0xf]
        %v673 = vld [vmem:[%s360 + $0xc] sm:$0xf]
        %v674 = vld [vmem:[%s360 + $0x10] sm:$0xf]
        %v675 = vld [vmem:[%s360 + $0x14] sm:$0xf]
        %v676 = vld [vmem:[%s360 + $0x18] sm:$0xf]
        %v677 = vld [vmem:[%s360 + $0x1c] sm:$0xf]
        %v678 = vld [vmem:[%s360 + $0x20] sm:$0xf]
        %v679 = vld [vmem:[%s360 + $0x24] sm:$0xf]
        %v680 = vld [vmem:[%s360 + $0x28] sm:$0xf]
        %v681 = vld [vmem:[%s360 + $0x2c] sm:$0xf]
        %v682 = vld [vmem:[%s360 + $0x30] sm:$0xf]
        %v683 = vld [vmem:[%s360 + $0x34] sm:$0xf]
        %v684 = vld [vmem:[%s360 + $0x38] sm:$0xf]
        %v685 = vld [vmem:[%s360 + $0x3c] sm:$0xf]
        %v686 = vld [vmem:[%s360 + $0x40] sm:$0xf]
        %v687 = vld [vmem:[%s360 + $0x44] sm:$0xf]
        %v688 = vld [vmem:[%s360 + $0x48] sm:$0xf]
        %v689 = vld [vmem:[%s360 + $0x4c] sm:$0xf]
        %v690 = vld [vmem:[%s360 + $0x50] sm:$0xf]
        %v691 = vld [vmem:[%s360 + $0x54] sm:$0xf]
        %v692 = vld [vmem:[%s360 + $0x58] sm:$0xf]
        %v693 = vld [vmem:[%s360 + $0x5c] sm:$0xf]
        %v694 = vld [vmem:[%s360 + $0x60] sm:$0xf]
        %v695 = vld [vmem:[%s360 + $0x64] sm:$0xf]
        %v696 = vld [vmem:[%s360 + $0x68] sm:$0xf]
        %v697 = vld [vmem:[%s360 + $0x6c] sm:$0xf]
        %v698 = vld [vmem:[%s360 + $0x70] sm:$0xf]
        %v699 = vld [vmem:[%s360 + $0x74] sm:$0xf]
        %v700 = vld [vmem:[%s360 + $0x78] sm:$0xf]
        %v701 = vld [vmem:[%s360 + $0x7c] sm:$0xf]
        %v734 = vunpack.c.l.b16 %v670
        %v735 = vunpack.c.l.b16 %v671
        %v736 = vunpack.c.l.b16 %v672
        %v737 = vunpack.c.l.b16 %v673
        %v738 = vunpack.c.l.b16 %v674
        %v739 = vunpack.c.l.b16 %v675
        %v740 = vunpack.c.l.b16 %v676
        %v741 = vunpack.c.l.b16 %v677
        %v742 = vunpack.c.l.b16 %v678
        %v743 = vunpack.c.l.b16 %v679
        %v744 = vunpack.c.l.b16 %v680
        %v745 = vunpack.c.l.b16 %v681
        %v746 = vunpack.c.l.b16 %v682
        %v747 = vunpack.c.l.b16 %v683
        %v748 = vunpack.c.l.b16 %v684
        %v749 = vunpack.c.l.b16 %v685
        %v750 = vunpack.c.l.b16 %v686
        %v751 = vunpack.c.l.b16 %v687
        %v752 = vunpack.c.l.b16 %v688
        %v753 = vunpack.c.l.b16 %v689
        %v754 = vunpack.c.l.b16 %v690
        %v755 = vunpack.c.l.b16 %v691
        %v756 = vunpack.c.l.b16 %v692
        %v757 = vunpack.c.l.b16 %v693
        %v758 = vunpack.c.l.b16 %v694
        %v759 = vunpack.c.l.b16 %v695
        %v760 = vunpack.c.l.b16 %v696
        %v761 = vunpack.c.l.b16 %v697
        %v762 = vunpack.c.l.b16 %v698
        %v763 = vunpack.c.l.b16 %v699
        %v764 = vunpack.c.l.b16 %v700
        %v765 = vunpack.c.l.b16 %v701
        %v766 = vpack.c.b16 %v735, %v734
        %v767 = vpack.c.b16 %v737, %v736
        %v768 = vpack.c.b16 %v739, %v738
        %v769 = vpack.c.b16 %v741, %v740
        %v770 = vpack.c.b16 %v743, %v742
        %v771 = vpack.c.b16 %v745, %v744
        %v772 = vpack.c.b16 %v747, %v746
        %v773 = vpack.c.b16 %v749, %v748
        %v774 = vpack.c.b16 %v751, %v750
        %v775 = vpack.c.b16 %v753, %v752
        %v776 = vpack.c.b16 %v755, %v754
        %v777 = vpack.c.b16 %v757, %v756
        %v778 = vpack.c.b16 %v759, %v758
        %v779 = vpack.c.b16 %v761, %v760
        %v780 = vpack.c.b16 %v763, %v762
        %v781 = vpack.c.b16 %v765, %v764
        %798 = vmatprep.subr.bf16.mxu0 0
        %799 = vmatpush1.bf16.xpose.msra.mxu0 %v766
        %800 = vmatprep.subr.bf16.mxu0 0
        %801 = vmatpush1.bf16.xpose.msra.mxu0 %v767
        %802 = vmatprep.subr.bf16.mxu0 0
        %803 = vmatpush1.bf16.xpose.msra.mxu0 %v768
        %804 = vmatprep.subr.bf16.mxu0 0
        %805 = vmatpush1.bf16.xpose.msra.mxu0 %v769
        %806 = vmatprep.subr.bf16.mxu0 0
        %807 = vmatpush1.bf16.xpose.msra.mxu0 %v770
        %808 = vmatprep.subr.bf16.mxu0 0
        %809 = vmatpush1.bf16.xpose.msra.mxu0 %v771
        %810 = vmatprep.subr.bf16.mxu0 0
        %811 = vmatpush1.bf16.xpose.msra.mxu0 %v772
        %812 = vmatprep.subr.bf16.mxu0 0
        %813 = vmatpush1.bf16.xpose.msra.mxu0 %v773
        %814 = vmatprep.subr.bf16.mxu0 0
        %815 = vmatpush1.bf16.xpose.msra.mxu0 %v774
        %816 = vmatprep.subr.bf16.mxu0 0
        %817 = vmatpush1.bf16.xpose.msra.mxu0 %v775
        %818 = vmatprep.subr.bf16.mxu0 0
        %819 = vmatpush1.bf16.xpose.msra.mxu0 %v776
        %820 = vmatprep.subr.bf16.mxu0 0
        %821 = vmatpush1.bf16.xpose.msra.mxu0 %v777
        %822 = vmatprep.subr.bf16.mxu0 0
        %823 = vmatpush1.bf16.xpose.msra.mxu0 %v778
        %824 = vmatprep.subr.bf16.mxu0 0
        %825 = vmatpush1.bf16.xpose.msra.mxu0 %v779
        %826 = vmatprep.subr.bf16.mxu0 0
        %827 = vmatpush1.bf16.xpose.msra.mxu0 %v780
        %828 = vmatprep.subr.bf16.mxu0 0
        %829 = vmatpush1.bf16.xpose.msra.mxu0 %v781
        %830 = vmatprep.mubr.bf16.mxu0 0
        %831 = vmatmul.mubr.bf16.gmra.mrb[0].mxu0 %v445
        %v832 = vpop.f32.mrb[0].mxu0
        %v833 = vadd.f32 0.0, %v832
        %v834 = vpop.f32.mrb[0].mxu0
        %v835 = vadd.f32 0.0, %v834
        %v836 = vpop.f32.mrb[0].mxu0
        %v837 = vadd.f32 0.0, %v836
        %v838 = vpop.f32.mrb[0].mxu0
        %v839 = vadd.f32 0.0, %v838
        %840 = vmatprep.mubr.bf16.mxu0 0
        %841 = vmatmul.mubr.bf16.gmra.mrb[0].mxu0 %v446
        %v842 = vpop.f32.mrb[0].mxu0
        %v843 = vadd.f32 0.0, %v842
        %v844 = vpop.f32.mrb[0].mxu0
        %v845 = vadd.f32 0.0, %v844
        %v846 = vpop.f32.mrb[0].mxu0
        %v847 = vadd.f32 0.0, %v846
        %v848 = vpop.f32.mrb[0].mxu0
        %v849 = vadd.f32 0.0, %v848
        %850 = vmatprep.mubr.bf16.mxu0 0
        %851 = vmatmul.mubr.bf16.gmra.mrb[0].mxu0 %v447
        %v852 = vpop.f32.mrb[0].mxu0
        %v853 = vadd.f32 0.0, %v852
        %v854 = vpop.f32.mrb[0].mxu0
        %v855 = vadd.f32 0.0, %v854
        %v856 = vpop.f32.mrb[0].mxu0
        %v857 = vadd.f32 0.0, %v856
        %v858 = vpop.f32.mrb[0].mxu0
        %v859 = vadd.f32 0.0, %v858
        %860 = vmatprep.mubr.bf16.mxu0 0
        %861 = vmatmul.mubr.bf16.gmra.mrb[0].mxu0 %v448
        %v862 = vpop.f32.mrb[0].mxu0
        %v863 = vadd.f32 0.0, %v862
        %v864 = vpop.f32.mrb[0].mxu0
        %v865 = vadd.f32 0.0, %v864
        %v866 = vpop.f32.mrb[0].mxu0
        %v867 = vadd.f32 0.0, %v866
        %v868 = vpop.f32.mrb[0].mxu0
        %v869 = vadd.f32 0.0, %v868
        %870 = vmatprep.mubr.bf16.mxu0 0
        %871 = vmatmul.mubr.bf16.gmra.mrb[0].mxu0 %v449
        %v872 = vpop.f32.mrb[0].mxu0
        %v873 = vadd.f32 0.0, %v872
        %v874 = vpop.f32.mrb[0].mxu0
        %v875 = vadd.f32 0.0, %v874
        %v876 = vpop.f32.mrb[0].mxu0
        %v877 = vadd.f32 0.0, %v876
        %v878 = vpop.f32.mrb[0].mxu0
        %v879 = vadd.f32 0.0, %v878
        %880 = vmatprep.mubr.bf16.mxu0 0
        %881 = vmatmul.mubr.bf16.gmra.mrb[0].mxu0 %v450
        %v882 = vpop.f32.mrb[0].mxu0
        %v883 = vadd.f32 0.0, %v882
        %v884 = vpop.f32.mrb[0].mxu0
        %v885 = vadd.f32 0.0, %v884
        %v886 = vpop.f32.mrb[0].mxu0
        %v887 = vadd.f32 0.0, %v886
        %v888 = vpop.f32.mrb[0].mxu0
        %v889 = vadd.f32 0.0, %v888
        %890 = vmatprep.mubr.bf16.mxu0 0
        %891 = vmatmul.mubr.bf16.gmra.mrb[0].mxu0 %v451
        %v892 = vpop.f32.mrb[0].mxu0
        %v893 = vadd.f32 0.0, %v892
        %v894 = vpop.f32.mrb[0].mxu0
        %v895 = vadd.f32 0.0, %v894
        %v896 = vpop.f32.mrb[0].mxu0
        %v897 = vadd.f32 0.0, %v896
        %v898 = vpop.f32.mrb[0].mxu0
        %v899 = vadd.f32 0.0, %v898
        %900 = vmatprep.mubr.bf16.mxu0 0
        %901 = vmatmul.mubr.bf16.gmra.mrb[0].mxu0 %v452
        %v902 = vpop.f32.mrb[0].mxu0
        %v903 = vadd.f32 0.0, %v902
        %v904 = vpop.f32.mrb[0].mxu0
        %v905 = vadd.f32 0.0, %v904
        %v906 = vpop.f32.mrb[0].mxu0
        %v907 = vadd.f32 0.0, %v906
        %v908 = vpop.f32.mrb[0].mxu0
        %v909 = vadd.f32 0.0, %v908
        %910 = vdwg.mxu0
        %v911 = vxor.u32 %v592, 2147483648
        %v912 = vxor.u32 %v594, 2147483648
        %v913 = vxor.u32 %v596, 2147483648
        %v914 = vxor.u32 %v598, 2147483648
        %v915 = vxor.u32 %v602, 2147483648
        %v916 = vxor.u32 %v604, 2147483648
        %v917 = vxor.u32 %v606, 2147483648
        %v918 = vxor.u32 %v608, 2147483648
        %v919 = vxor.u32 %v612, 2147483648
        %v920 = vxor.u32 %v614, 2147483648
        %v921 = vxor.u32 %v616, 2147483648
        %v922 = vxor.u32 %v618, 2147483648
        %v923 = vxor.u32 %v622, 2147483648
        %v924 = vxor.u32 %v624, 2147483648
        %v925 = vxor.u32 %v626, 2147483648
        %v926 = vxor.u32 %v628, 2147483648
        %v927 = vxor.u32 %v632, 2147483648
        %v928 = vxor.u32 %v634, 2147483648
        %v929 = vxor.u32 %v636, 2147483648
        %v930 = vxor.u32 %v638, 2147483648
        %v931 = vxor.u32 %v642, 2147483648
        %v932 = vxor.u32 %v644, 2147483648
        %v933 = vxor.u32 %v646, 2147483648
        %v934 = vxor.u32 %v648, 2147483648
        %v935 = vxor.u32 %v652, 2147483648
        %v936 = vxor.u32 %v654, 2147483648
        %v937 = vxor.u32 %v656, 2147483648
        %v938 = vxor.u32 %v658, 2147483648
        %v939 = vxor.u32 %v662, 2147483648
        %v940 = vxor.u32 %v664, 2147483648
        %v941 = vxor.u32 %v666, 2147483648
        %v942 = vxor.u32 %v668, 2147483648
        %v943 = vmul.f32 %v911, 1.442695
        %v944 = vpow.pop %v943
        %v945 = vmul.f32 %v912, 1.442695
        %v946 = vpow.pop %v945
        %v947 = vmul.f32 %v913, 1.442695
        %v948 = vpow.pop %v947
        %v949 = vmul.f32 %v914, 1.442695
        %v950 = vpow.pop %v949
        %v951 = vmul.f32 %v915, 1.442695
        %v952 = vpow.pop %v951
        %v953 = vmul.f32 %v916, 1.442695
        %v954 = vpow.pop %v953
        %v955 = vmul.f32 %v917, 1.442695
        %v956 = vpow.pop %v955
        %v957 = vmul.f32 %v918, 1.442695
        %v958 = vpow.pop %v957
        %v959 = vmul.f32 %v919, 1.442695
        %v960 = vpow.pop %v959
        %v961 = vmul.f32 %v920, 1.442695
        %v962 = vpow.pop %v961
        %v963 = vmul.f32 %v921, 1.442695
        %v964 = vpow.pop %v963
        %v965 = vmul.f32 %v922, 1.442695
        %v966 = vpow.pop %v965
        %v967 = vmul.f32 %v923, 1.442695
        %v968 = vpow.pop %v967
        %v969 = vmul.f32 %v924, 1.442695
        %v970 = vpow.pop %v969
        %v971 = vmul.f32 %v925, 1.442695
        %v972 = vpow.pop %v971
        %v973 = vmul.f32 %v926, 1.442695
        %v974 = vpow.pop %v973
        %v975 = vmul.f32 %v927, 1.442695
        %v976 = vpow.pop %v975
        %v977 = vmul.f32 %v928, 1.442695
        %v978 = vpow.pop %v977
        %v979 = vmul.f32 %v929, 1.442695
        %v980 = vpow.pop %v979
        %v981 = vmul.f32 %v930, 1.442695
        %v982 = vpow.pop %v981
        %v983 = vmul.f32 %v931, 1.442695
        %v984 = vpow.pop %v983
        %v985 = vmul.f32 %v932, 1.442695
        %v986 = vpow.pop %v985
        %v987 = vmul.f32 %v933, 1.442695
        %v988 = vpow.pop %v987
        %v989 = vmul.f32 %v934, 1.442695
        %v990 = vpow.pop %v989
        %v991 = vmul.f32 %v935, 1.442695
        %v992 = vpow.pop %v991
        %v993 = vmul.f32 %v936, 1.442695
        %v994 = vpow.pop %v993
        %v995 = vmul.f32 %v937, 1.442695
        %v996 = vpow.pop %v995
        %v997 = vmul.f32 %v938, 1.442695
        %v998 = vpow.pop %v997
        %v999 = vmul.f32 %v939, 1.442695
        %v1000 = vpow.pop %v999
        %v1001 = vmul.f32 %v940, 1.442695
        %v1002 = vpow.pop %v1001
        %v1003 = vmul.f32 %v941, 1.442695
        %v1004 = vpow.pop %v1003
        %v1005 = vmul.f32 %v942, 1.442695
        %v1006 = vpow.pop %v1005
        %v1007 = vadd.f32 %v944, 1.0
        %v1008 = vadd.f32 %v946, 1.0
        %v1009 = vadd.f32 %v948, 1.0
        %v1010 = vadd.f32 %v950, 1.0
        %v1011 = vadd.f32 %v952, 1.0
        %v1012 = vadd.f32 %v954, 1.0
        %v1013 = vadd.f32 %v956, 1.0
        %v1014 = vadd.f32 %v958, 1.0
        %v1015 = vadd.f32 %v960, 1.0
        %v1016 = vadd.f32 %v962, 1.0
        %v1017 = vadd.f32 %v964, 1.0
        %v1018 = vadd.f32 %v966, 1.0
        %v1019 = vadd.f32 %v968, 1.0
        %v1020 = vadd.f32 %v970, 1.0
        %v1021 = vadd.f32 %v972, 1.0
        %v1022 = vadd.f32 %v974, 1.0
        %v1023 = vadd.f32 %v976, 1.0
        %v1024 = vadd.f32 %v978, 1.0
        %v1025 = vadd.f32 %v980, 1.0
        %v1026 = vadd.f32 %v982, 1.0
        %v1027 = vadd.f32 %v984, 1.0
        %v1028 = vadd.f32 %v986, 1.0
        %v1029 = vadd.f32 %v988, 1.0
        %v1030 = vadd.f32 %v990, 1.0
        %v1031 = vadd.f32 %v992, 1.0
        %v1032 = vadd.f32 %v994, 1.0
        %v1033 = vadd.f32 %v996, 1.0
        %v1034 = vadd.f32 %v998, 1.0
        %v1035 = vadd.f32 %v1000, 1.0
        %v1036 = vadd.f32 %v1002, 1.0
        %v1037 = vadd.f32 %v1004, 1.0
        %v1038 = vadd.f32 %v1006, 1.0
        %v1039 = vrcp.pop %v1007
        %v1040 = vmul.f32 1.0, %v1039
        %v1041 = vrcp.pop %v1008
        %v1042 = vmul.f32 1.0, %v1041
        %v1043 = vrcp.pop %v1009
        %v1044 = vmul.f32 1.0, %v1043
        %v1045 = vrcp.pop %v1010
        %v1046 = vmul.f32 1.0, %v1045
        %v1047 = vrcp.pop %v1011
        %v1048 = vmul.f32 1.0, %v1047
        %v1049 = vrcp.pop %v1012
        %v1050 = vmul.f32 1.0, %v1049
        %v1051 = vrcp.pop %v1013
        %v1052 = vmul.f32 1.0, %v1051
        %v1053 = vrcp.pop %v1014
        %v1054 = vmul.f32 1.0, %v1053
        %v1055 = vrcp.pop %v1015
        %v1056 = vmul.f32 1.0, %v1055
        %v1057 = vrcp.pop %v1016
        %v1058 = vmul.f32 1.0, %v1057
        %v1059 = vrcp.pop %v1017
        %v1060 = vmul.f32 1.0, %v1059
        %v1061 = vrcp.pop %v1018
        %v1062 = vmul.f32 1.0, %v1061
        %v1063 = vrcp.pop %v1019
        %v1064 = vmul.f32 1.0, %v1063
        %v1065 = vrcp.pop %v1020
        %v1066 = vmul.f32 1.0, %v1065
        %v1067 = vrcp.pop %v1021
        %v1068 = vmul.f32 1.0, %v1067
        %v1069 = vrcp.pop %v1022
        %v1070 = vmul.f32 1.0, %v1069
        %v1071 = vrcp.pop %v1023
        %v1072 = vmul.f32 1.0, %v1071
        %v1073 = vrcp.pop %v1024
        %v1074 = vmul.f32 1.0, %v1073
        %v1075 = vrcp.pop %v1025
        %v1076 = vmul.f32 1.0, %v1075
        %v1077 = vrcp.pop %v1026
        %v1078 = vmul.f32 1.0, %v1077
        %v1079 = vrcp.pop %v1027
        %v1080 = vmul.f32 1.0, %v1079
        %v1081 = vrcp.pop %v1028
        %v1082 = vmul.f32 1.0, %v1081
        %v1083 = vrcp.pop %v1029
        %v1084 = vmul.f32 1.0, %v1083
        %v1085 = vrcp.pop %v1030
        %v1086 = vmul.f32 1.0, %v1085
        %v1087 = vrcp.pop %v1031
        %v1088 = vmul.f32 1.0, %v1087
        %v1089 = vrcp.pop %v1032
        %v1090 = vmul.f32 1.0, %v1089
        %v1091 = vrcp.pop %v1033
        %v1092 = vmul.f32 1.0, %v1091
        %v1093 = vrcp.pop %v1034
        %v1094 = vmul.f32 1.0, %v1093
        %v1095 = vrcp.pop %v1035
        %v1096 = vmul.f32 1.0, %v1095
        %v1097 = vrcp.pop %v1036
        %v1098 = vmul.f32 1.0, %v1097
        %v1099 = vrcp.pop %v1037
        %v1100 = vmul.f32 1.0, %v1099
        %v1101 = vrcp.pop %v1038
        %v1102 = vmul.f32 1.0, %v1101
        %v1103 = vmul.f32 %v592, %v1040
        %v1104 = vmul.f32 %v594, %v1042
        %v1105 = vmul.f32 %v596, %v1044
        %v1106 = vmul.f32 %v598, %v1046
        %v1107 = vmul.f32 %v602, %v1048
        %v1108 = vmul.f32 %v604, %v1050
        %v1109 = vmul.f32 %v606, %v1052
        %v1110 = vmul.f32 %v608, %v1054
        %v1111 = vmul.f32 %v612, %v1056
        %v1112 = vmul.f32 %v614, %v1058
        %v1113 = vmul.f32 %v616, %v1060
        %v1114 = vmul.f32 %v618, %v1062
        %v1115 = vmul.f32 %v622, %v1064
        %v1116 = vmul.f32 %v624, %v1066
        %v1117 = vmul.f32 %v626, %v1068
        %v1118 = vmul.f32 %v628, %v1070
        %v1119 = vmul.f32 %v632, %v1072
        %v1120 = vmul.f32 %v634, %v1074
        %v1121 = vmul.f32 %v636, %v1076
        %v1122 = vmul.f32 %v638, %v1078
        %v1123 = vmul.f32 %v642, %v1080
        %v1124 = vmul.f32 %v644, %v1082
        %v1125 = vmul.f32 %v646, %v1084
        %v1126 = vmul.f32 %v648, %v1086
        %v1127 = vmul.f32 %v652, %v1088
        %v1128 = vmul.f32 %v654, %v1090
        %v1129 = vmul.f32 %v656, %v1092
        %v1130 = vmul.f32 %v658, %v1094
        %v1131 = vmul.f32 %v662, %v1096
        %v1132 = vmul.f32 %v664, %v1098
        %v1133 = vmul.f32 %v666, %v1100
        %v1134 = vmul.f32 %v668, %v1102
        %v1135 = vmul.f32 %v1103, %v833
        %v1136 = vmul.f32 %v1104, %v835
        %v1137 = vmul.f32 %v1105, %v837
        %v1138 = vmul.f32 %v1106, %v839
        %v1139 = vmul.f32 %v1107, %v843
        %v1140 = vmul.f32 %v1108, %v845
        %v1141 = vmul.f32 %v1109, %v847
        %v1142 = vmul.f32 %v1110, %v849
        %v1143 = vmul.f32 %v1111, %v853
        %v1144 = vmul.f32 %v1112, %v855
        %v1145 = vmul.f32 %v1113, %v857
        %v1146 = vmul.f32 %v1114, %v859
        %v1147 = vmul.f32 %v1115, %v863
        %v1148 = vmul.f32 %v1116, %v865
        %v1149 = vmul.f32 %v1117, %v867
        %v1150 = vmul.f32 %v1118, %v869
        %v1151 = vmul.f32 %v1119, %v873
        %v1152 = vmul.f32 %v1120, %v875
        %v1153 = vmul.f32 %v1121, %v877
        %v1154 = vmul.f32 %v1122, %v879
        %v1155 = vmul.f32 %v1123, %v883
        %v1156 = vmul.f32 %v1124, %v885
        %v1157 = vmul.f32 %v1125, %v887
        %v1158 = vmul.f32 %v1126, %v889
        %v1159 = vmul.f32 %v1127, %v893
        %v1160 = vmul.f32 %v1128, %v895
        %v1161 = vmul.f32 %v1129, %v897
        %v1162 = vmul.f32 %v1130, %v899
        %v1163 = vmul.f32 %v1131, %v903
        %v1164 = vmul.f32 %v1132, %v905
        %v1165 = vmul.f32 %v1133, %v907
        %v1166 = vmul.f32 %v1134, %v909
        %v1167 = vpack.c.bf16 %v1137, %v1135
        %v1168 = vpack.c.bf16 %v1138, %v1136
        %v1169 = vpack.c.bf16 %v1141, %v1139
        %v1170 = vpack.c.bf16 %v1142, %v1140
        %v1171 = vpack.c.bf16 %v1145, %v1143
        %v1172 = vpack.c.bf16 %v1146, %v1144
        %v1173 = vpack.c.bf16 %v1149, %v1147
        %v1174 = vpack.c.bf16 %v1150, %v1148
        %v1175 = vpack.c.bf16 %v1153, %v1151
        %v1176 = vpack.c.bf16 %v1154, %v1152
        %v1177 = vpack.c.bf16 %v1157, %v1155
        %v1178 = vpack.c.bf16 %v1158, %v1156
        %v1179 = vpack.c.bf16 %v1161, %v1159
        %v1180 = vpack.c.bf16 %v1162, %v1160
        %v1181 = vpack.c.bf16 %v1165, %v1163
        %v1182 = vpack.c.bf16 %v1166, %v1164
        %v1183 = vld [vmem:[%s311] sm:$0xff]
        %v1184 = vld [vmem:[%s311 + $0x8] sm:$0xff]
        %v1185 = vld [vmem:[%s311 + $0x10] sm:$0xff]
        %v1186 = vld [vmem:[%s311 + $0x18] sm:$0xff]
        %v1187 = vld [vmem:[%s311 + $0x20] sm:$0xff]
        %v1188 = vld [vmem:[%s311 + $0x28] sm:$0xff]
        %v1189 = vld [vmem:[%s311 + $0x30] sm:$0xff]
        %v1190 = vld [vmem:[%s311 + $0x38] sm:$0xff]
        %v1191 = vld [vmem:[%s311 + $0x40] sm:$0xff]
        %v1192 = vld [vmem:[%s311 + $0x48] sm:$0xff]
        %v1193 = vld [vmem:[%s311 + $0x50] sm:$0xff]
        %v1194 = vld [vmem:[%s311 + $0x58] sm:$0xff]
        %v1195 = vld [vmem:[%s311 + $0x60] sm:$0xff]
        %v1196 = vld [vmem:[%s311 + $0x68] sm:$0xff]
        %v1197 = vld [vmem:[%s311 + $0x70] sm:$0xff]
        %v1198 = vld [vmem:[%s311 + $0x78] sm:$0xff]
        %v1215 = vunpack.c.l.b16 %v1183
        %v1216 = vunpack.c.h.b16 %v1183
        %v1217 = vunpack.c.l.b16 %v1184
        %v1218 = vunpack.c.h.b16 %v1184
        %v1219 = vunpack.c.l.b16 %v1185
        %v1220 = vunpack.c.h.b16 %v1185
        %v1221 = vunpack.c.l.b16 %v1186
        %v1222 = vunpack.c.h.b16 %v1186
        %v1223 = vunpack.c.l.b16 %v1187
        %v1224 = vunpack.c.h.b16 %v1187
        %v1225 = vunpack.c.l.b16 %v1188
        %v1226 = vunpack.c.h.b16 %v1188
        %v1227 = vunpack.c.l.b16 %v1189
        %v1228 = vunpack.c.h.b16 %v1189
        %v1229 = vunpack.c.l.b16 %v1190
        %v1230 = vunpack.c.h.b16 %v1190
        %v1231 = vunpack.c.l.b16 %v1191
        %v1232 = vunpack.c.h.b16 %v1191
        %v1233 = vunpack.c.l.b16 %v1192
        %v1234 = vunpack.c.h.b16 %v1192
        %v1235 = vunpack.c.l.b16 %v1193
        %v1236 = vunpack.c.h.b16 %v1193
        %v1237 = vunpack.c.l.b16 %v1194
        %v1238 = vunpack.c.h.b16 %v1194
        %v1239 = vunpack.c.l.b16 %v1195
        %v1240 = vunpack.c.h.b16 %v1195
        %v1241 = vunpack.c.l.b16 %v1196
        %v1242 = vunpack.c.h.b16 %v1196
        %v1243 = vunpack.c.l.b16 %v1197
        %v1244 = vunpack.c.h.b16 %v1197
        %v1245 = vunpack.c.l.b16 %v1198
        %v1246 = vunpack.c.h.b16 %v1198
        %v1247 = vpack.c.b16 %v1217, %v1215
        %v1248 = vpack.c.b16 %v1218, %v1216
        %v1249 = vpack.c.b16 %v1221, %v1219
        %v1250 = vpack.c.b16 %v1222, %v1220
        %v1251 = vpack.c.b16 %v1225, %v1223
        %v1252 = vpack.c.b16 %v1226, %v1224
        %v1253 = vpack.c.b16 %v1229, %v1227
        %v1254 = vpack.c.b16 %v1230, %v1228
        %v1255 = vpack.c.b16 %v1233, %v1231
        %v1256 = vpack.c.b16 %v1234, %v1232
        %v1257 = vpack.c.b16 %v1237, %v1235
        %v1258 = vpack.c.b16 %v1238, %v1236
        %v1259 = vpack.c.b16 %v1241, %v1239
        %v1260 = vpack.c.b16 %v1242, %v1240
        %v1261 = vpack.c.b16 %v1245, %v1243
        %v1262 = vpack.c.b16 %v1246, %v1244
        %1279 = vmatprep.subr.bf16.mxu0 %v1248
        %1280 = vmatpush1.bf16.xpose.msra.mxu0 %v1247
        %1281 = vmatprep.subr.bf16.mxu0 %v1250
        %1282 = vmatpush1.bf16.xpose.msra.mxu0 %v1249
        %1283 = vmatprep.subr.bf16.mxu0 %v1252
        %1284 = vmatpush1.bf16.xpose.msra.mxu0 %v1251
        %1285 = vmatprep.subr.bf16.mxu0 %v1254
        %1286 = vmatpush1.bf16.xpose.msra.mxu0 %v1253
        %1287 = vmatprep.subr.bf16.mxu0 %v1256
        %1288 = vmatpush1.bf16.xpose.msra.mxu0 %v1255
        %1289 = vmatprep.subr.bf16.mxu0 %v1258
        %1290 = vmatpush1.bf16.xpose.msra.mxu0 %v1257
        %1291 = vmatprep.subr.bf16.mxu0 %v1260
        %1292 = vmatpush1.bf16.xpose.msra.mxu0 %v1259
        %1293 = vmatprep.subr.bf16.mxu0 %v1262
        %1294 = vmatpush1.bf16.xpose.msra.mxu0 %v1261
        %1295 = vmatprep.subr.bf16.mxu0 0
        %1296 = vmatpush1.bf16.xpose.msra.mxu0 0
        %1297 = vmatprep.subr.bf16.mxu0 0
        %1298 = vmatpush1.bf16.xpose.msra.mxu0 0
        %1299 = vmatprep.subr.bf16.mxu0 0
        %1300 = vmatpush1.bf16.xpose.msra.mxu0 0
        %1301 = vmatprep.subr.bf16.mxu0 0
        %1302 = vmatpush1.bf16.xpose.msra.mxu0 0
        %1303 = vmatprep.subr.bf16.mxu0 0
        %1304 = vmatpush1.bf16.xpose.msra.mxu0 0
        %1305 = vmatprep.subr.bf16.mxu0 0
        %1306 = vmatpush1.bf16.xpose.msra.mxu0 0
        %1307 = vmatprep.subr.bf16.mxu0 0
        %1308 = vmatpush1.bf16.xpose.msra.mxu0 0
        %1309 = vmatprep.subr.bf16.mxu0 0
        %1310 = vmatpush1.bf16.xpose.msra.mxu0 0
        %1311 = vmatprep.mubr.bf16.mxu0 %v1168
        %1312 = vmatmul.mubr.bf16.gmra.mrb[0].mxu0 %v1167
        %v1313 = vpop.f32.mrb[0].mxu0
        %v1314 = vadd.f32 0.0, %v1313
        %v1315 = vpop.f32.mrb[0].mxu0
        %v1316 = vpop.f32.mrb[0].mxu0
        %v1317 = vadd.f32 0.0, %v1316
        %v1318 = vpop.f32.mrb[0].mxu0
        %1319 = vmatprep.mubr.bf16.mxu0 %v1170
        %1320 = vmatmul.mubr.bf16.gmra.mrb[0].mxu0 %v1169
        %v1321 = vpop.f32.mrb[0].mxu0
        %v1322 = vadd.f32 0.0, %v1321
        %v1323 = vpop.f32.mrb[0].mxu0
        %v1324 = vpop.f32.mrb[0].mxu0
        %v1325 = vadd.f32 0.0, %v1324
        %v1326 = vpop.f32.mrb[0].mxu0
        %1327 = vmatprep.mubr.bf16.mxu0 %v1172
        %1328 = vmatmul.mubr.bf16.gmra.mrb[0].mxu0 %v1171
        %v1329 = vpop.f32.mrb[0].mxu0
        %v1330 = vadd.f32 0.0, %v1329
        %v1331 = vpop.f32.mrb[0].mxu0
        %v1332 = vpop.f32.mrb[0].mxu0
        %v1333 = vadd.f32 0.0, %v1332
        %v1334 = vpop.f32.mrb[0].mxu0
        %1335 = vmatprep.mubr.bf16.mxu0 %v1174
        %1336 = vmatmul.mubr.bf16.gmra.mrb[0].mxu0 %v1173
        %v1337 = vpop.f32.mrb[0].mxu0
        %v1338 = vadd.f32 0.0, %v1337
        %v1339 = vpop.f32.mrb[0].mxu0
        %v1340 = vpop.f32.mrb[0].mxu0
        %v1341 = vadd.f32 0.0, %v1340
        %v1342 = vpop.f32.mrb[0].mxu0
        %1343 = vmatprep.mubr.bf16.mxu0 %v1176
        %1344 = vmatmul.mubr.bf16.gmra.mrb[0].mxu0 %v1175
        %v1345 = vpop.f32.mrb[0].mxu0
        %v1346 = vadd.f32 0.0, %v1345
        %v1347 = vpop.f32.mrb[0].mxu0
        %v1348 = vpop.f32.mrb[0].mxu0
        %v1349 = vadd.f32 0.0, %v1348
        %v1350 = vpop.f32.mrb[0].mxu0
        %1351 = vmatprep.mubr.bf16.mxu0 %v1178
        %1352 = vmatmul.mubr.bf16.gmra.mrb[0].mxu0 %v1177
        %v1353 = vpop.f32.mrb[0].mxu0
        %v1354 = vadd.f32 0.0, %v1353
        %v1355 = vpop.f32.mrb[0].mxu0
        %v1356 = vpop.f32.mrb[0].mxu0
        %v1357 = vadd.f32 0.0, %v1356
        %v1358 = vpop.f32.mrb[0].mxu0
        %1359 = vmatprep.mubr.bf16.mxu0 %v1180
        %1360 = vmatmul.mubr.bf16.gmra.mrb[0].mxu0 %v1179
        %v1361 = vpop.f32.mrb[0].mxu0
        %v1362 = vadd.f32 0.0, %v1361
        %v1363 = vpop.f32.mrb[0].mxu0
        %v1364 = vpop.f32.mrb[0].mxu0
        %v1365 = vadd.f32 0.0, %v1364
        %v1366 = vpop.f32.mrb[0].mxu0
        %1367 = vmatprep.mubr.bf16.mxu0 %v1182
        %1368 = vmatmul.mubr.bf16.gmra.mrb[0].mxu0 %v1181
        %v1369 = vpop.f32.mrb[0].mxu0
        %v1370 = vadd.f32 0.0, %v1369
        %v1371 = vpop.f32.mrb[0].mxu0
        %v1372 = vpop.f32.mrb[0].mxu0
        %v1373 = vadd.f32 0.0, %v1372
        %v1374 = vpop.f32.mrb[0].mxu0
        %1375 = vdwg.mxu0
        %p1376 = scmp.eq.s32.totalorder %s21, 0
        // Predicated region
        $region75: #{feed_forward_pallas.1} parent=69 // pred_check
          %p1377 = pneg %p1376
        $region76: #{feed_forward_pallas.1} parent=69 // pred_check_branch
          %1379 = sbr.rel (%p1377) target = $region78
        $region77: #{feed_forward_pallas.1} parent=69 // pred_region
          %1380 = vst [vmem:[#allocation2] sm:$0xff] %v1314
          %1381 = vst [vmem:[#allocation2 + $0x8] sm:$0xff] %v1317
          %1382 = vst [vmem:[#allocation2 + $0x10] sm:$0xff] %v1322
          %1383 = vst [vmem:[#allocation2 + $0x18] sm:$0xff] %v1325
          %1384 = vst [vmem:[#allocation2 + $0x20] sm:$0xff] %v1330
          %1385 = vst [vmem:[#allocation2 + $0x28] sm:$0xff] %v1333
          %1386 = vst [vmem:[#allocation2 + $0x30] sm:$0xff] %v1338
          %1387 = vst [vmem:[#allocation2 + $0x38] sm:$0xff] %v1341
          %1388 = vst [vmem:[#allocation2 + $0x40] sm:$0xff] %v1346
          %1389 = vst [vmem:[#allocation2 + $0x48] sm:$0xff] %v1349
          %1390 = vst [vmem:[#allocation2 + $0x50] sm:$0xff] %v1354
          %1391 = vst [vmem:[#allocation2 + $0x58] sm:$0xff] %v1357
          %1392 = vst [vmem:[#allocation2 + $0x60] sm:$0xff] %v1362
          %1393 = vst [vmem:[#allocation2 + $0x68] sm:$0xff] %v1365
          %1394 = vst [vmem:[#allocation2 + $0x70] sm:$0xff] %v1370
          %1395 = vst [vmem:[#allocation2 + $0x78] sm:$0xff] %v1373
        $region78: #{feed_forward_pallas.1} parent=69 // pred_fallthru
          _
        %p1396 = scmp.gt.s32.totalorder %s21, 0
        // Predicated region
        $region79: #{feed_forward_pallas.1} parent=69 // pred_check
          %p1397 = pneg %p1396
        $region80: #{feed_forward_pallas.1} parent=69 // pred_check_branch
          %1399 = sbr.rel (%p1397) target = $region82
        $region81: #{feed_forward_pallas.1} parent=69 // pred_region
          %v1400 = vld [vmem:[#allocation2] sm:$0xff]
          %v1401 = vld [vmem:[#allocation2 + $0x8] sm:$0xff]
          %v1402 = vld [vmem:[#allocation2 + $0x10] sm:$0xff]
          %v1403 = vld [vmem:[#allocation2 + $0x18] sm:$0xff]
          %v1404 = vld [vmem:[#allocation2 + $0x20] sm:$0xff]
          %v1405 = vld [vmem:[#allocation2 + $0x28] sm:$0xff]
          %v1406 = vld [vmem:[#allocation2 + $0x30] sm:$0xff]
          %v1407 = vld [vmem:[#allocation2 + $0x38] sm:$0xff]
          %v1408 = vld [vmem:[#allocation2 + $0x40] sm:$0xff]
          %v1409 = vld [vmem:[#allocation2 + $0x48] sm:$0xff]
          %v1410 = vld [vmem:[#allocation2 + $0x50] sm:$0xff]
          %v1411 = vld [vmem:[#allocation2 + $0x58] sm:$0xff]
          %v1412 = vld [vmem:[#allocation2 + $0x60] sm:$0xff]
          %v1413 = vld [vmem:[#allocation2 + $0x68] sm:$0xff]
          %v1414 = vld [vmem:[#allocation2 + $0x70] sm:$0xff]
          %v1415 = vld [vmem:[#allocation2 + $0x78] sm:$0xff]
          %v1416 = vadd.f32 %v1400, %v1314
          %v1417 = vadd.f32 %v1401, %v1317
          %v1418 = vadd.f32 %v1402, %v1322
          %v1419 = vadd.f32 %v1403, %v1325
          %v1420 = vadd.f32 %v1404, %v1330
          %v1421 = vadd.f32 %v1405, %v1333
          %v1422 = vadd.f32 %v1406, %v1338
          %v1423 = vadd.f32 %v1407, %v1341
          %v1424 = vadd.f32 %v1408, %v1346
          %v1425 = vadd.f32 %v1409, %v1349
          %v1426 = vadd.f32 %v1410, %v1354
          %v1427 = vadd.f32 %v1411, %v1357
          %v1428 = vadd.f32 %v1412, %v1362
          %v1429 = vadd.f32 %v1413, %v1365
          %v1430 = vadd.f32 %v1414, %v1370
          %v1431 = vadd.f32 %v1415, %v1373
          %1432 = vst [vmem:[#allocation2] sm:$0xff] %v1416
          %1433 = vst [vmem:[#allocation2 + $0x8] sm:$0xff] %v1417
          %1434 = vst [vmem:[#allocation2 + $0x10] sm:$0xff] %v1418
          %1435 = vst [vmem:[#allocation2 + $0x18] sm:$0xff] %v1419
          %1436 = vst [vmem:[#allocation2 + $0x20] sm:$0xff] %v1420
          %1437 = vst [vmem:[#allocation2 + $0x28] sm:$0xff] %v1421
          %1438 = vst [vmem:[#allocation2 + $0x30] sm:$0xff] %v1422
          %1439 = vst [vmem:[#allocation2 + $0x38] sm:$0xff] %v1423
          %1440 = vst [vmem:[#allocation2 + $0x40] sm:$0xff] %v1424
          %1441 = vst [vmem:[#allocation2 + $0x48] sm:$0xff] %v1425
          %1442 = vst [vmem:[#allocation2 + $0x50] sm:$0xff] %v1426
          %1443 = vst [vmem:[#allocation2 + $0x58] sm:$0xff] %v1427
          %1444 = vst [vmem:[#allocation2 + $0x60] sm:$0xff] %v1428
          %1445 = vst [vmem:[#allocation2 + $0x68] sm:$0xff] %v1429
          %1446 = vst [vmem:[#allocation2 + $0x70] sm:$0xff] %v1430
          %1447 = vst [vmem:[#allocation2 + $0x78] sm:$0xff] %v1431
        $region82: #{feed_forward_pallas.1} parent=69 // pred_fallthru
          _
        %p1448 = scmp.eq.s32.totalorder %s21, 1
        // Predicated region
        $region83: #{feed_forward_pallas.1} parent=69 // pred_check
          %p1449 = pneg %p1448
        $region84: #{feed_forward_pallas.1} parent=69 // pred_check_branch
          %1451 = sbr.rel (%p1449) target = $region86
        $region85: #{feed_forward_pallas.1} parent=69 // pred_region
          %v1452 = vld [vmem:[#allocation2] sm:$0xff]
          %v1453 = vld [vmem:[#allocation2 + $0x8] sm:$0xff]
          %v1454 = vld [vmem:[#allocation2 + $0x10] sm:$0xff]
          %v1455 = vld [vmem:[#allocation2 + $0x18] sm:$0xff]
          %v1456 = vld [vmem:[#allocation2 + $0x20] sm:$0xff]
          %v1457 = vld [vmem:[#allocation2 + $0x28] sm:$0xff]
          %v1458 = vld [vmem:[#allocation2 + $0x30] sm:$0xff]
          %v1459 = vld [vmem:[#allocation2 + $0x38] sm:$0xff]
          %v1460 = vld [vmem:[#allocation2 + $0x40] sm:$0xff]
          %v1461 = vld [vmem:[#allocation2 + $0x48] sm:$0xff]
          %v1462 = vld [vmem:[#allocation2 + $0x50] sm:$0xff]
          %v1463 = vld [vmem:[#allocation2 + $0x58] sm:$0xff]
          %v1464 = vld [vmem:[#allocation2 + $0x60] sm:$0xff]
          %v1465 = vld [vmem:[#allocation2 + $0x68] sm:$0xff]
          %v1466 = vld [vmem:[#allocation2 + $0x70] sm:$0xff]
          %v1467 = vld [vmem:[#allocation2 + $0x78] sm:$0xff]
          %v1468 = vpack.c.bf16 %v1453, %v1452
          %v1469 = vpack.c.bf16 %v1455, %v1454
          %v1470 = vpack.c.bf16 %v1457, %v1456
          %v1471 = vpack.c.bf16 %v1459, %v1458
          %v1472 = vpack.c.bf16 %v1461, %v1460
          %v1473 = vpack.c.bf16 %v1463, %v1462
          %v1474 = vpack.c.bf16 %v1465, %v1464
          %v1475 = vpack.c.bf16 %v1467, %v1466
          %v1484 = vunpack.c.l.b16 %v1468
          %v1485 = vunpack.c.h.b16 %v1468
          %v1486 = vunpack.c.l.b16 %v1469
          %v1487 = vunpack.c.h.b16 %v1469
          %v1488 = vunpack.c.l.b16 %v1470
          %v1489 = vunpack.c.h.b16 %v1470
          %v1490 = vunpack.c.l.b16 %v1471
          %v1491 = vunpack.c.h.b16 %v1471
          %v1492 = vunpack.c.l.b16 %v1472
          %v1493 = vunpack.c.h.b16 %v1472
          %v1494 = vunpack.c.l.b16 %v1473
          %v1495 = vunpack.c.h.b16 %v1473
          %v1496 = vunpack.c.l.b16 %v1474
          %v1497 = vunpack.c.h.b16 %v1474
          %v1498 = vunpack.c.l.b16 %v1475
          %v1499 = vunpack.c.h.b16 %v1475
          %v1500 = vpack.c.b16 %v1484, %v1484
          %v1501 = vpack.c.b16 %v1485, %v1485
          %v1502 = vpack.c.b16 %v1486, %v1486
          %v1503 = vpack.c.b16 %v1487, %v1487
          %v1504 = vpack.c.b16 %v1488, %v1488
          %v1505 = vpack.c.b16 %v1489, %v1489
          %v1506 = vpack.c.b16 %v1490, %v1490
          %v1507 = vpack.c.b16 %v1491, %v1491
          %v1508 = vpack.c.b16 %v1492, %v1492
          %v1509 = vpack.c.b16 %v1493, %v1493
          %v1510 = vpack.c.b16 %v1494, %v1494
          %v1511 = vpack.c.b16 %v1495, %v1495
          %v1512 = vpack.c.b16 %v1496, %v1496
          %v1513 = vpack.c.b16 %v1497, %v1497
          %v1514 = vpack.c.b16 %v1498, %v1498
          %v1515 = vpack.c.b16 %v1499, %v1499
          %1532 = vst [vmem:[#allocation4] sm:$0xf] %v1500
          %1533 = vst [vmem:[#allocation4 + $0x4] sm:$0xf] %v1501
          %1534 = vst [vmem:[#allocation4 + $0x8] sm:$0xf] %v1502
          %1535 = vst [vmem:[#allocation4 + $0xc] sm:$0xf] %v1503
          %1536 = vst [vmem:[#allocation4 + $0x10] sm:$0xf] %v1504
          %1537 = vst [vmem:[#allocation4 + $0x14] sm:$0xf] %v1505
          %1538 = vst [vmem:[#allocation4 + $0x18] sm:$0xf] %v1506
          %1539 = vst [vmem:[#allocation4 + $0x1c] sm:$0xf] %v1507
          %1540 = vst [vmem:[#allocation4 + $0x20] sm:$0xf] %v1508
          %1541 = vst [vmem:[#allocation4 + $0x24] sm:$0xf] %v1509
          %1542 = vst [vmem:[#allocation4 + $0x28] sm:$0xf] %v1510
          %1543 = vst [vmem:[#allocation4 + $0x2c] sm:$0xf] %v1511
          %1544 = vst [vmem:[#allocation4 + $0x30] sm:$0xf] %v1512
          %1545 = vst [vmem:[#allocation4 + $0x34] sm:$0xf] %v1513
          %1546 = vst [vmem:[#allocation4 + $0x38] sm:$0xf] %v1514
          %1547 = vst [vmem:[#allocation4 + $0x3c] sm:$0xf] %v1515
        $region86: #{feed_forward_pallas.1} parent=69 // pred_fallthru
          _
        // Predicated region
        $region87: #{feed_forward_pallas.1} parent=69 // pred_check
          %p1548 = pneg %p150
        $region88: #{feed_forward_pallas.1} parent=69 // pred_check_branch
          %1550 = sbr.rel (%p1548) target = $region90
        $region89: #{feed_forward_pallas.1} parent=69 // pred_region
          %s1551 = smul.u32 16, %s20
          %s1553 = ssub.s32 1024, 1024
          %1554 = vsyncadd [#allocation5], %s1553
          %s1555 = smul.addr %s1551, 64
          %s1556 = scalar_lea.hbm %s4, %s1555
          %s1557 = sshll.u32 [#allocation4], 4
          %s1558 = int_to_ptr.vmem [resolvable:$true] %s1557
          %1563 = dma.vmem_to_hbm [thread:$0]  %s1558, 1024, %s1556, [#allocation5], 64, 64, 4
        $region90: #{feed_forward_pallas.1} parent=69 // pred_fallthru
          _
        // Predicated region
        $region91: #{feed_forward_pallas.1} parent=69 // pred_check
          %p1564 = pneg %p150
        $region92: #{feed_forward_pallas.1} parent=69 // pred_check_branch
          %1566 = sbr.rel (%p1564) target = $region94
        $region93: #{feed_forward_pallas.1} parent=69 // pred_region
          %1567 = dma.done [#allocation5], 1024
        $region94: #{feed_forward_pallas.1} parent=69 // pred_fallthru
          _
      $region70: #{feed_forward_pallas.1} parent=5 // pred_fallthru
        _
      %p1568 = scmp.le.s32.totalorder 2, %s11
      // Predicated region
      $region95: #{feed_forward_pallas.1} parent=5 // pred_check
        %p1569 = pneg %p1568
      $region96: #{feed_forward_pallas.1} parent=5 // pred_check_branch
        %1571 = sbr.rel (%p1569) target = $region98
      $region97: #{feed_forward_pallas.1} parent=5 // pred_region
        %s1572 = ssub.s32 %s11, 2
      $region98: #{feed_forward_pallas.1} parent=5 // pred_fallthru
        _
    $region6: #{feed_forward_pallas.1} parent=1 // loop_footer
      %s15 = sadd.s32 1, %s11
    $region7: #{feed_forward_pallas.1} parent=1 // loop_footer_branch
      %10 = sbr.rel target = $region3
    $region8: #{feed_forward_pallas.1} parent=1 // loop_exit
      _
    %1573 = vsyncpa [#allocation5], 1
    %s1574 = scalar_lea.sflag [#allocation5], 1
    %1575 = vsyncpa %s1574, 1

</llo_original>
